<compile_context>
chip_gen: v7x
topology: tpu7x:2x2x1
jax: 0.10.0
libtpu: 0.0.40
codegen_flags: <defaults>
</compile_context>

<pallas_src>
import jax
import jax.numpy as jnp
from jax import lax
from jax.experimental import pallas as pl
from jax.experimental.pallas import tpu as pltpu

HIDDEN = 256      # nn.LSTM(hidden_size=256)
OUT_DIM = 2       # nn.Linear(256, 2)
OUT_PAD = 128     # lane-dense padded head output (sliced back to 2 in wrapper)


def lstm_net_kernel(x_ref, wih_ref, whh_ref, b_ref, wout_ref, bout_ref,
                    out_ref, xg_ref, h_ref, c_ref):
    """One (batch_block, time_chunk) grid step.

    x_ref    : (1, Tt*Bb, D)    bf16  time-major rows: row = t_local*Bb + b_local
    wih_ref  : (D, 4H)          bf16  input->gate weights, gate order [i, f, o, g]
    whh_ref  : (H, 4H)          bf16  hidden->gate weights, gate order [i, f, o, g]
    b_ref    : (1, 4H)          f32   bias_ih + bias_hh, gate order [i, f, o, g]
    wout_ref : (H, OUT_PAD)     bf16  Linear weight, zero-padded to 128 lanes
    bout_ref : (1, OUT_PAD)     f32   Linear bias, zero-padded
    out_ref  : (1, Bb, OUT_PAD) f32   result for this batch block (last chunk only)
    xg_ref   : (Tt*Bb, 4H)      bf16|f32 scratch: hoisted input projection
    h_ref/c_ref : (Bb, H)       f32   scratch: recurrent state carried across chunks
    """
    t_chunk = pl.program_id(1)
    H = HIDDEN
    Bb = h_ref.shape[0]
    Tt = x_ref.shape[1] // Bb

    # New batch block -> reset the recurrent state.
    @pl.when(t_chunk == 0)
    def _init():
        h_ref[...] = jnp.zeros_like(h_ref)
        c_ref[...] = jnp.zeros_like(c_ref)

    # (1) Hoisted input projection + folded bias for the whole chunk: one big
    #     MXU matmul (bf16 in / f32 accumulate), stored compactly in xg's dtype.
    xg_ref[...] = (
        jnp.dot(x_ref[0], wih_ref[...], preferred_element_type=jnp.float32)
        + b_ref[...]).astype(xg_ref.dtype)

    # (2) Serial recurrence; h/c live in the loop carry (vregs), not VMEM.
    def step(t, carry):
        h, c = carry                                                 # f32 (Bb, H)
        row = pl.multiple_of(t * Bb, Bb)
        # TODO(synk): on v6e/v7x the (256, 1024) bf16 W_hh (4x 256^2 tiles) could
        # be held weight-stationary across the recurrence with
        # pltpu.matmul_push_rhs / matmul_acc_lhs / matmul_pop; the unrolled loop
        # below keeps this portable (v5e cannot hold all 16 128^2 tiles) and lets
        # Mosaic hoist/overlap the weight feed instead.
        gates = (xg_ref[pl.ds(row, Bb), :].astype(jnp.float32)
                 + jnp.dot(h.astype(jnp.bfloat16), whh_ref[...],
                           preferred_element_type=jnp.float32))      # (Bb, 4H) f32
        sig = jax.nn.sigmoid(gates[:, :3 * H])                       # [i | f | o]
        i_g = sig[:, 0 * H:1 * H]
        f_g = sig[:, 1 * H:2 * H]
        o_g = sig[:, 2 * H:3 * H]
        g_g = jnp.tanh(gates[:, 3 * H:])
        c_new = f_g * c + i_g * g_g
        h_new = o_g * jnp.tanh(c_new)
        return h_new, c_new

    # Unroll so cross-step scheduling is visible to the LLO (xg slice for step
    # t+1 does not depend on h_t, so its load/MXU push can overlap step t).
    if Tt <= 8:
        unroll = Tt
    elif Tt % 4 == 0:
        unroll = 4
    elif Tt % 2 == 0:
        unroll = 2
    else:
        unroll = 1
    h_fin, c_fin = lax.fori_loop(0, Tt, step, (h_ref[...], c_ref[...]),
                                 unroll=unroll)
    h_ref[...] = h_fin
    c_ref[...] = c_fin

    # (3) Final Linear on the last timestep's hidden state (lane-dense output).
    @pl.when(t_chunk == pl.num_programs(1) - 1)
    def _final():
        out_ref[0] = (
            jnp.dot(h_fin.astype(jnp.bfloat16), wout_ref[...],
                    preferred_element_type=jnp.float32)
            + bout_ref[...])


def _reorder_gates(w):
    """torch gate order [i, f, g, o] (stacked on axis 0) -> [i, f, o, g]."""
    i, f, g, o = jnp.split(w, 4, axis=0)
    return jnp.concatenate([i, f, o, g], axis=0)


def _round_up(x, m):
    return (x + m - 1) // m * m


def _pick_batch_block(B):
    """Padded batch Bp and per-block batch Bb.

    Bb is capped at 64 so the f32 h/c loop carries stay inside the 64-vreg
    file, and >=2 batch blocks are created whenever the padded batch allows it
    so the 'parallel' batch axis can shard across v7x's two TensorCores
    (no effect on single-TC v5e/v6e).
    """
    Bp0 = max(8, _round_up(B, 8))
    if Bp0 >= 16:
        Bb = min(64, _round_up(Bp0 // 2, 8))
    else:
        Bb = Bp0
    Bp = _round_up(Bp0, Bb)
    return Bp, Bb


def _vmem_budget():
    """(max xg rows per time chunk, vmem limit cap) from the chip's VMEM size."""
    try:
        cap = int(pltpu.get_tpu_info().vmem_capacity_bytes)
    except Exception:
        cap = 64 << 20
    if cap >= (100 << 20):          # v5e / v6e: 128 MiB physical VMEM
        return 2048, 96 << 20
    return 1024, 48 << 20           # v7x: 64 MiB physical VMEM


def _pick_time_chunk(T, Bb, max_rows):
    """Largest divisor of T with Tt*Bb <= max_rows."""
    best = 1
    for tt in range(1, T + 1):
        if T % tt == 0 and tt * Bb <= max_rows:
            best = tt
    return best


def lstm_net_forward(x, w_ih, w_hh, b_ih, b_hh, w_out, b_out, *, time_chunk=None):
    """x: (B, T, D) float32; torch-layout LSTM/Linear params. Returns (B, 2) f32."""
    B, T, D = x.shape
    H = HIDDEN

    Bp, Bb = _pick_batch_block(B)
    n_bblk = Bp // Bb

    max_rows, vmem_cap = _vmem_budget()
    if time_chunk is None:
        time_chunk = _pick_time_chunk(T, Bb, max_rows)
    assert T % time_chunk == 0, "time_chunk must divide T"
    n_tchunk = T // time_chunk
    rows = time_chunk * Bb

    # bf16 xg only when the per-step dynamic row slice (start = t*Bb) is
    # 16-sublane aligned (bf16 packs 2 rows per sublane word); otherwise f32.
    xg_dtype = jnp.bfloat16 if Bb % 16 == 0 else jnp.float32

    # x -> (n_bblk, T*Bb, D) bf16 with row = t*Bb + b_local inside each block:
    # one pad + ONE transpose fused with the bf16 cast; each time chunk of a
    # block is then a contiguous HBM slab for the auto-pipelined DMA.
    x_p = jnp.pad(x.astype(jnp.float32), ((0, Bp - B), (0, 0), (0, 0)))   # (Bp,T,D)
    x_in = (x_p.reshape(n_bblk, Bb, T, D)
                .transpose(0, 2, 1, 3)                                    # (nB,T,Bb,D)
                .astype(jnp.bfloat16)
                .reshape(n_bblk, T * Bb, D))

    # Weights: reorder gates to [i,f,o,g], pre-transpose, bf16 operands.
    wih_t = jnp.transpose(_reorder_gates(w_ih)).astype(jnp.bfloat16)      # (D, 4H)
    whh_t = jnp.transpose(_reorder_gates(w_hh)).astype(jnp.bfloat16)      # (H, 4H)
    bias = _reorder_gates(b_ih + b_hh).reshape(1, 4 * H).astype(jnp.float32)

    wout_p = jnp.zeros((H, OUT_PAD), jnp.float32).at[:, :OUT_DIM].set(
        jnp.transpose(w_out)).astype(jnp.bfloat16)                        # (H, 128)
    bout_p = jnp.zeros((1, OUT_PAD), jnp.float32).at[0, :OUT_DIM].set(
        b_out.astype(jnp.float32))

    # VMEM budget: double-buffered x chunk + (double-buffered) weights + scratch
    # + out, with margin; capped per chip generation.
    xg_bytes = rows * 4 * H * jnp.dtype(xg_dtype).itemsize
    x_bytes = 2 * rows * D * 2
    w_bytes = 2 * ((D + H) * 4 * H * 2 + H * OUT_PAD * 2 + (4 * H + OUT_PAD) * 4)
    hc_bytes = 2 * Bb * H * 4
    out_bytes = 2 * Bb * OUT_PAD * 4
    vmem_limit = int(min(max(xg_bytes + x_bytes + w_bytes + hc_bytes + out_bytes
                             + (4 << 20), 32 << 20), vmem_cap))

    out_padded = pl.pallas_call(
        lstm_net_kernel,
        out_shape=jax.ShapeDtypeStruct((n_bblk, Bb, OUT_PAD), jnp.float32),
        grid=(n_bblk, n_tchunk),
        in_specs=[
            pl.BlockSpec((1, rows, D), lambda b, t: (b, t, 0)),           # x chunk
            pl.BlockSpec((D, 4 * H), lambda b, t: (0, 0)),                # W_ih
            pl.BlockSpec((H, 4 * H), lambda b, t: (0, 0)),                # W_hh
            pl.BlockSpec((1, 4 * H), lambda b, t: (0, 0)),                # bias
            pl.BlockSpec((H, OUT_PAD), lambda b, t: (0, 0)),              # W_out
            pl.BlockSpec((1, OUT_PAD), lambda b, t: (0, 0)),              # b_out
        ],
        out_specs=pl.BlockSpec((1, Bb, OUT_PAD), lambda b, t: (b, 0, 0)),
        scratch_shapes=[
            pltpu.VMEM((rows, 4 * H), xg_dtype),      # hoisted x-projection
            pltpu.VMEM((Bb, H), jnp.float32),         # h carry
            pltpu.VMEM((Bb, H), jnp.float32),         # c carry
        ],
        compiler_params=pltpu.CompilerParams(
            dimension_semantics=("parallel", "arbitrary"),
            vmem_limit_bytes=vmem_limit),
    )(x_in, wih_t, whh_t, bias, wout_p, bout_p)

    return out_padded.reshape(Bp, OUT_PAD)[:B, :OUT_DIM]


def lstm_net_reference(x, w_ih, w_hh, b_ih, b_hh, w_out, b_out,
                       matmul_dtype=jnp.float32, bf16_xgate=False):
    """Pure-JAX reference with torch nn.LSTM + Linear semantics.

    matmul_dtype=bfloat16 mirrors the kernel's MXU numerics (bf16 operands,
    f32 accumulation / f32 state); bf16_xgate additionally rounds the hoisted
    x-projection to bf16, matching the kernel's bf16-xg path (Bb % 16 == 0).
    """
    B, T, D = x.shape
    H = HIDDEN
    h = jnp.zeros((B, H), jnp.float32)
    c = jnp.zeros((B, H), jnp.float32)
    wih_t = w_ih.T.astype(matmul_dtype)
    whh_t = w_hh.T.astype(matmul_dtype)
    bias = (b_ih + b_hh).astype(jnp.float32)
    for t in range(T):
        xg = jnp.dot(x[:, t, :].astype(matmul_dtype), wih_t,
                     preferred_element_type=jnp.float32) + bias
        if bf16_xgate:
            xg = xg.astype(jnp.bfloat16).astype(jnp.float32)
        gates = xg + jnp.dot(h.astype(matmul_dtype), whh_t,
                             preferred_element_type=jnp.float32)
        i_g = jax.nn.sigmoid(gates[:, 0 * H:1 * H])
        f_g = jax.nn.sigmoid(gates[:, 1 * H:2 * H])
        g_g = jnp.tanh(gates[:, 2 * H:3 * H])
        o_g = jax.nn.sigmoid(gates[:, 3 * H:4 * H])
        c = f_g * c + i_g * g_g
        h = o_g * jnp.tanh(c)
    return (jnp.dot(h.astype(matmul_dtype), w_out.T.astype(matmul_dtype),
                    preferred_element_type=jnp.float32) + b_out)


if __name__ == "__main__":
    B, T, D = 2, 8, 32
    H = HIDDEN

    key = jax.random.PRNGKey(0)
    kx, k1, k2, k3, k4, k5, k6 = jax.random.split(key, 7)

    # Deterministic synthetic params; scale matches torch's U(-1/sqrt(H), 1/sqrt(H)).
    s = 1.0 / jnp.sqrt(jnp.float32(H))
    x = jax.random.normal(kx, (B, T, D), jnp.float32)
    w_ih = jax.random.uniform(k1, (4 * H, D), jnp.float32, -s, s)
    w_hh = jax.random.uniform(k2, (4 * H, H), jnp.float32, -s, s)
    b_ih = jax.random.uniform(k3, (4 * H,), jnp.float32, -s, s)
    b_hh = jax.random.uniform(k4, (4 * H,), jnp.float32, -s, s)
    w_out = jax.random.uniform(k5, (OUT_DIM, H), jnp.float32, -s, s)
    b_out = jax.random.uniform(k6, (OUT_DIM,), jnp.float32, -s, s)

    # time_chunk=4 -> grid (1, 2): exercises the multi-chunk recurrent carry
    # plus the fully-unrolled per-chunk recurrence.
    out = lstm_net_forward(x, w_ih, w_hh, b_ih, b_hh, w_out, b_out, time_chunk=4)
    out = jax.block_until_ready(out)
    assert out.shape == (B, OUT_DIM)

    # Numerics-matched reference (bf16 matmul operands, f32 accumulation/state).
    # The demo batch block is 8 rows, so the kernel keeps xg in f32 -> bf16_xgate=False.
    ref_bf16 = lstm_net_reference(x, w_ih, w_hh, b_ih, b_hh, w_out, b_out,
                                  matmul_dtype=jnp.bfloat16, bf16_xgate=False)
    assert jnp.allclose(out, ref_bf16, atol=2e-3, rtol=2e-3), (out, ref_bf16)

    # Full-f32 torch-style reference: only bf16 operand rounding differs.
    ref_f32 = lstm_net_reference(x, w_ih, w_hh, b_ih, b_hh, w_out, b_out,
                                 matmul_dtype=jnp.float32)
    assert jnp.allclose(out, ref_f32, atol=3e-2, rtol=3e-2), (out, ref_f32)

    print("KERNEL_OK")
</pallas_src>

<mosaic_0001>
module attributes {stable_mosaic.version = 11 : i64} {
  func.func @lstm_net_kernel(%arg0: i32, %arg1: i32, %arg2: memref<1x32x32xbf16, #tpu.memory_space<vmem>>, %arg3: memref<32x1024xbf16, #tpu.memory_space<vmem>>, %arg4: memref<256x1024xbf16, #tpu.memory_space<vmem>>, %arg5: memref<1x1024xf32, #tpu.memory_space<vmem>>, %arg6: memref<256x128xbf16, #tpu.memory_space<vmem>>, %arg7: memref<1x128xf32, #tpu.memory_space<vmem>>, %arg8: memref<1x8x128xf32, #tpu.memory_space<vmem>>, %arg9: memref<32x1024xf32, #tpu.memory_space<vmem>>, %arg10: memref<8x256xf32, #tpu.memory_space<vmem>>, %arg11: memref<8x256xf32, #tpu.memory_space<vmem>>) attributes {dimension_semantics = [#tpu.dimension_semantics<parallel>, #tpu.dimension_semantics<arbitrary>], iteration_bounds = array<i64: 1, 2>, scalar_prefetch = 0 : i64, scratch_operands = 3 : i64, tpu.core_type = #tpu.core_type<tc>, window_params = [{transform_indices = @transform_0, window_bounds = array<i64: 1, 32, 32>}, {pipeline_mode = #tpu.pipeline_mode<synchronous>, transform_indices = @transform_1, window_bounds = array<i64: 32, 1024>}, {pipeline_mode = #tpu.pipeline_mode<synchronous>, transform_indices = @transform_2, window_bounds = array<i64: 256, 1024>}, {pipeline_mode = #tpu.pipeline_mode<synchronous>, transform_indices = @transform_3, window_bounds = array<i64: 1, 1024>}, {pipeline_mode = #tpu.pipeline_mode<synchronous>, transform_indices = @transform_4, window_bounds = array<i64: 256, 128>}, {pipeline_mode = #tpu.pipeline_mode<synchronous>, transform_indices = @transform_5, window_bounds = array<i64: 1, 128>}, {transform_indices = @transform_6, window_bounds = array<i64: 1, 8, 128>}]} {
    %c0_i32 = arith.constant 0 : i32
    %0 = arith.cmpi eq, %arg1, %c0_i32 : i32
    %1 = arith.extui %0 : i1 to i32
    %c0_i32_0 = arith.constant 0 : i32
    %2 = arith.cmpi ne, %1, %c0_i32_0 : i32
    scf.if %2 {
      %cst_43 = arith.constant 0.000000e+00 : f32
      %114 = vector.broadcast %cst_43 : f32 to vector<8x256xf32>
      %c0_44 = arith.constant 0 : index
      %c0_45 = arith.constant 0 : index
      %115 = vector.load %arg10[%c0_44, %c0_45] : memref<8x256xf32, #tpu.memory_space<vmem>>, vector<8x256xf32>
      tpu.vector_store %arg10[%c0_44, %c0_45], %114 {strides = array<i32>} : memref<8x256xf32, #tpu.memory_space<vmem>>, vector<8x256xf32>,
      %cst_46 = arith.constant 0.000000e+00 : f32
      %116 = vector.broadcast %cst_46 : f32 to vector<8x256xf32>
      %c0_47 = arith.constant 0 : index
      %c0_48 = arith.constant 0 : index
      %117 = vector.load %arg11[%c0_47, %c0_48] : memref<8x256xf32, #tpu.memory_space<vmem>>, vector<8x256xf32>
      tpu.vector_store %arg11[%c0_47, %c0_48], %116 {strides = array<i32>} : memref<8x256xf32, #tpu.memory_space<vmem>>, vector<8x256xf32>,
    } else {
    }
    %c0 = arith.constant 0 : index
    %c0_1 = arith.constant 0 : index
    %c0_2 = arith.constant 0 : index
    %3 = vector.load %arg2[%c0, %c0_1, %c0_2] : memref<1x32x32xbf16, #tpu.memory_space<vmem>>, vector<1x32x32xbf16>
    %4 = vector.shape_cast %3 : vector<1x32x32xbf16> to vector<32x32xbf16>
    %c0_3 = arith.constant 0 : index
    %c0_4 = arith.constant 0 : index
    %5 = vector.load %arg3[%c0_3, %c0_4] : memref<32x1024xbf16, #tpu.memory_space<vmem>>, vector<32x1024xbf16>
    %cst = arith.constant dense<0.000000e+00> : vector<32x1024xf32>
    %6 = tpu.matmul %4, %5, %cst {dimension_numbers = #tpu.dot_dimension_numbers<[1], [0], [0], [1], [0, 0, 1, 1], [], []>} : vector<32x32xbf16>, vector<32x1024xbf16>, vector<32x1024xf32> -> vector<32x1024xf32>
    %c0_5 = arith.constant 0 : index
    %c0_6 = arith.constant 0 : index
    %7 = vector.load %arg5[%c0_5, %c0_6] : memref<1x1024xf32, #tpu.memory_space<vmem>>, vector<1x1024xf32>
    %8 = vector.broadcast %7 : vector<1x1024xf32> to vector<32x1024xf32>
    %9 = arith.addf %6, %8 : vector<32x1024xf32>
    %c0_7 = arith.constant 0 : index
    %c0_8 = arith.constant 0 : index
    %10 = vector.load %arg9[%c0_7, %c0_8] : memref<32x1024xf32, #tpu.memory_space<vmem>>, vector<32x1024xf32>
    tpu.vector_store %arg9[%c0_7, %c0_8], %9 {strides = array<i32>} : memref<32x1024xf32, #tpu.memory_space<vmem>>, vector<32x1024xf32>,
    %c0_9 = arith.constant 0 : index
    %c0_10 = arith.constant 0 : index
    %11 = vector.load %arg10[%c0_9, %c0_10] : memref<8x256xf32, #tpu.memory_space<vmem>>, vector<8x256xf32>
    %c0_11 = arith.constant 0 : index
    %c0_12 = arith.constant 0 : index
    %12 = vector.load %arg11[%c0_11, %c0_12] : memref<8x256xf32, #tpu.memory_space<vmem>>, vector<8x256xf32>
    %c0_i32_13 = arith.constant 0 : i32
    %c8_i32 = arith.constant 8 : i32
    %13 = arith.muli %c0_i32_13, %c8_i32 : i32
    %14 = tpu.assume_multiple %13, 8 : i32
    %15 = arith.index_cast %14 : i32 to index
    %c0_14 = arith.constant 0 : index
    %16 = vector.load %arg9[%15, %c0_14] : memref<32x1024xf32, #tpu.memory_space<vmem>>, vector<8x1024xf32>
    %17 = arith.truncf %11 : vector<8x256xf32> to vector<8x256xbf16>
    %c0_15 = arith.constant 0 : index
    %c0_16 = arith.constant 0 : index
    %18 = vector.load %arg4[%c0_15, %c0_16] : memref<256x1024xbf16, #tpu.memory_space<vmem>>, vector<256x1024xbf16>
    %cst_17 = arith.constant dense<0.000000e+00> : vector<8x1024xf32>
    %19 = tpu.matmul %17, %18, %cst_17 {dimension_numbers = #tpu.dot_dimension_numbers<[1], [0], [0], [1], [0, 0, 1, 1], [], []>} : vector<8x256xbf16>, vector<256x1024xbf16>, vector<8x1024xf32> -> vector<8x1024xf32>
    %20 = arith.addf %16, %19 : vector<8x1024xf32>
    %21 = vector.extract_strided_slice %20 {offsets = [0, 0], sizes = [8, 768], strides = [1, 1]} : vector<8x1024xf32> to vector<8x768xf32>
    %22 = arith.negf %21 : vector<8x768xf32>
    %23 = math.exp %22 : vector<8x768xf32>
    %cst_18 = arith.constant 1.000000e+00 : f32
    %24 = vector.broadcast %cst_18 : f32 to vector<8x768xf32>
    %25 = arith.addf %24, %23 : vector<8x768xf32>
    %26 = arith.divf %24, %25 : vector<8x768xf32>
    %27 = vector.extract_strided_slice %26 {offsets = [0, 0], sizes = [8, 256], strides = [1, 1]} : vector<8x768xf32> to vector<8x256xf32>
    %28 = vector.extract_strided_slice %26 {offsets = [0, 256], sizes = [8, 256], strides = [1, 1]} : vector<8x768xf32> to vector<8x256xf32>
    %29 = vector.extract_strided_slice %26 {offsets = [0, 512], sizes = [8, 256], strides = [1, 1]} : vector<8x768xf32> to vector<8x256xf32>
    %30 = vector.extract_strided_slice %20 {offsets = [0, 768], sizes = [8, 256], strides = [1, 1]} : vector<8x1024xf32> to vector<8x256xf32>
    %31 = math.tanh %30 : vector<8x256xf32>
    %32 = arith.mulf %28, %12 : vector<8x256xf32>
    %33 = arith.mulf %27, %31 : vector<8x256xf32>
    %34 = arith.addf %32, %33 : vector<8x256xf32>
    %35 = math.tanh %34 : vector<8x256xf32>
    %36 = arith.mulf %29, %35 : vector<8x256xf32>
    %c1_i32 = arith.constant 1 : i32
    %c8_i32_19 = arith.constant 8 : i32
    %37 = arith.muli %c1_i32, %c8_i32_19 : i32
    %38 = tpu.assume_multiple %37, 8 : i32
    %39 = arith.index_cast %38 : i32 to index
    %c0_20 = arith.constant 0 : index
    %40 = vector.load %arg9[%39, %c0_20] : memref<32x1024xf32, #tpu.memory_space<vmem>>, vector<8x1024xf32>
    %41 = arith.truncf %36 : vector<8x256xf32> to vector<8x256xbf16>
    %c0_21 = arith.constant 0 : index
    %c0_22 = arith.constant 0 : index
    %42 = vector.load %arg4[%c0_21, %c0_22] : memref<256x1024xbf16, #tpu.memory_space<vmem>>, vector<256x1024xbf16>
    %cst_23 = arith.constant dense<0.000000e+00> : vector<8x1024xf32>
    %43 = tpu.matmul %41, %42, %cst_23 {dimension_numbers = #tpu.dot_dimension_numbers<[1], [0], [0], [1], [0, 0, 1, 1], [], []>} : vector<8x256xbf16>, vector<256x1024xbf16>, vector<8x1024xf32> -> vector<8x1024xf32>
    %44 = arith.addf %40, %43 : vector<8x1024xf32>
    %45 = vector.extract_strided_slice %44 {offsets = [0, 0], sizes = [8, 768], strides = [1, 1]} : vector<8x1024xf32> to vector<8x768xf32>
    %46 = arith.negf %45 : vector<8x768xf32>
    %47 = math.exp %46 : vector<8x768xf32>
    %cst_24 = arith.constant 1.000000e+00 : f32
    %48 = vector.broadcast %cst_24 : f32 to vector<8x768xf32>
    %49 = arith.addf %48, %47 : vector<8x768xf32>
    %50 = arith.divf %48, %49 : vector<8x768xf32>
    %51 = vector.extract_strided_slice %50 {offsets = [0, 0], sizes = [8, 256], strides = [1, 1]} : vector<8x768xf32> to vector<8x256xf32>
    %52 = vector.extract_strided_slice %50 {offsets = [0, 256], sizes = [8, 256], strides = [1, 1]} : vector<8x768xf32> to vector<8x256xf32>
    %53 = vector.extract_strided_slice %50 {offsets = [0, 512], sizes = [8, 256], strides = [1, 1]} : vector<8x768xf32> to vector<8x256xf32>
    %54 = vector.extract_strided_slice %44 {offsets = [0, 768], sizes = [8, 256], strides = [1, 1]} : vector<8x1024xf32> to vector<8x256xf32>
    %55 = math.tanh %54 : vector<8x256xf32>
    %56 = arith.mulf %52, %34 : vector<8x256xf32>
    %57 = arith.mulf %51, %55 : vector<8x256xf32>
    %58 = arith.addf %56, %57 : vector<8x256xf32>
    %59 = math.tanh %58 : vector<8x256xf32>
    %60 = arith.mulf %53, %59 : vector<8x256xf32>
    %c2_i32 = arith.constant 2 : i32
    %c8_i32_25 = arith.constant 8 : i32
    %61 = arith.muli %c2_i32, %c8_i32_25 : i32
    %62 = tpu.assume_multiple %61, 8 : i32
    %63 = arith.index_cast %62 : i32 to index
    %c0_26 = arith.constant 0 : index
    %64 = vector.load %arg9[%63, %c0_26] : memref<32x1024xf32, #tpu.memory_space<vmem>>, vector<8x1024xf32>
    %65 = arith.truncf %60 : vector<8x256xf32> to vector<8x256xbf16>
    %c0_27 = arith.constant 0 : index
    %c0_28 = arith.constant 0 : index
    %66 = vector.load %arg4[%c0_27, %c0_28] : memref<256x1024xbf16, #tpu.memory_space<vmem>>, vector<256x1024xbf16>
    %cst_29 = arith.constant dense<0.000000e+00> : vector<8x1024xf32>
    %67 = tpu.matmul %65, %66, %cst_29 {dimension_numbers = #tpu.dot_dimension_numbers<[1], [0], [0], [1], [0, 0, 1, 1], [], []>} : vector<8x256xbf16>, vector<256x1024xbf16>, vector<8x1024xf32> -> vector<8x1024xf32>
    %68 = arith.addf %64, %67 : vector<8x1024xf32>
    %69 = vector.extract_strided_slice %68 {offsets = [0, 0], sizes = [8, 768], strides = [1, 1]} : vector<8x1024xf32> to vector<8x768xf32>
    %70 = arith.negf %69 : vector<8x768xf32>
    %71 = math.exp %70 : vector<8x768xf32>
    %cst_30 = arith.constant 1.000000e+00 : f32
    %72 = vector.broadcast %cst_30 : f32 to vector<8x768xf32>
    %73 = arith.addf %72, %71 : vector<8x768xf32>
    %74 = arith.divf %72, %73 : vector<8x768xf32>
    %75 = vector.extract_strided_slice %74 {offsets = [0, 0], sizes = [8, 256], strides = [1, 1]} : vector<8x768xf32> to vector<8x256xf32>
    %76 = vector.extract_strided_slice %74 {offsets = [0, 256], sizes = [8, 256], strides = [1, 1]} : vector<8x768xf32> to vector<8x256xf32>
    %77 = vector.extract_strided_slice %74 {offsets = [0, 512], sizes = [8, 256], strides = [1, 1]} : vector<8x768xf32> to vector<8x256xf32>
    %78 = vector.extract_strided_slice %68 {offsets = [0, 768], sizes = [8, 256], strides = [1, 1]} : vector<8x1024xf32> to vector<8x256xf32>
    %79 = math.tanh %78 : vector<8x256xf32>
    %80 = arith.mulf %76, %58 : vector<8x256xf32>
    %81 = arith.mulf %75, %79 : vector<8x256xf32>
    %82 = arith.addf %80, %81 : vector<8x256xf32>
    %83 = math.tanh %82 : vector<8x256xf32>
    %84 = arith.mulf %77, %83 : vector<8x256xf32>
    %c3_i32 = arith.constant 3 : i32
    %c8_i32_31 = arith.constant 8 : i32
    %85 = arith.muli %c3_i32, %c8_i32_31 : i32
    %86 = tpu.assume_multiple %85, 8 : i32
    %87 = arith.index_cast %86 : i32 to index
    %c0_32 = arith.constant 0 : index
    %88 = vector.load %arg9[%87, %c0_32] : memref<32x1024xf32, #tpu.memory_space<vmem>>, vector<8x1024xf32>
    %89 = arith.truncf %84 : vector<8x256xf32> to vector<8x256xbf16>
    %c0_33 = arith.constant 0 : index
    %c0_34 = arith.constant 0 : index
    %90 = vector.load %arg4[%c0_33, %c0_34] : memref<256x1024xbf16, #tpu.memory_space<vmem>>, vector<256x1024xbf16>
    %cst_35 = arith.constant dense<0.000000e+00> : vector<8x1024xf32>
    %91 = tpu.matmul %89, %90, %cst_35 {dimension_numbers = #tpu.dot_dimension_numbers<[1], [0], [0], [1], [0, 0, 1, 1], [], []>} : vector<8x256xbf16>, vector<256x1024xbf16>, vector<8x1024xf32> -> vector<8x1024xf32>
    %92 = arith.addf %88, %91 : vector<8x1024xf32>
    %93 = vector.extract_strided_slice %92 {offsets = [0, 0], sizes = [8, 768], strides = [1, 1]} : vector<8x1024xf32> to vector<8x768xf32>
    %94 = arith.negf %93 : vector<8x768xf32>
    %95 = math.exp %94 : vector<8x768xf32>
    %cst_36 = arith.constant 1.000000e+00 : f32
    %96 = vector.broadcast %cst_36 : f32 to vector<8x768xf32>
    %97 = arith.addf %96, %95 : vector<8x768xf32>
    %98 = arith.divf %96, %97 : vector<8x768xf32>
    %99 = vector.extract_strided_slice %98 {offsets = [0, 0], sizes = [8, 256], strides = [1, 1]} : vector<8x768xf32> to vector<8x256xf32>
    %100 = vector.extract_strided_slice %98 {offsets = [0, 256], sizes = [8, 256], strides = [1, 1]} : vector<8x768xf32> to vector<8x256xf32>
    %101 = vector.extract_strided_slice %98 {offsets = [0, 512], sizes = [8, 256], strides = [1, 1]} : vector<8x768xf32> to vector<8x256xf32>
    %102 = vector.extract_strided_slice %92 {offsets = [0, 768], sizes = [8, 256], strides = [1, 1]} : vector<8x1024xf32> to vector<8x256xf32>
    %103 = math.tanh %102 : vector<8x256xf32>
    %104 = arith.mulf %100, %82 : vector<8x256xf32>
    %105 = arith.mulf %99, %103 : vector<8x256xf32>
    %106 = arith.addf %104, %105 : vector<8x256xf32>
    %107 = math.tanh %106 : vector<8x256xf32>
    %108 = arith.mulf %101, %107 : vector<8x256xf32>
    %c4_i32 = arith.constant 4 : i32
    %c0_37 = arith.constant 0 : index
    %c0_38 = arith.constant 0 : index
    %109 = vector.load %arg10[%c0_37, %c0_38] : memref<8x256xf32, #tpu.memory_space<vmem>>, vector<8x256xf32>
    tpu.vector_store %arg10[%c0_37, %c0_38], %108 {strides = array<i32>} : memref<8x256xf32, #tpu.memory_space<vmem>>, vector<8x256xf32>,
    %c0_39 = arith.constant 0 : index
    %c0_40 = arith.constant 0 : index
    %110 = vector.load %arg11[%c0_39, %c0_40] : memref<8x256xf32, #tpu.memory_space<vmem>>, vector<8x256xf32>
    tpu.vector_store %arg11[%c0_39, %c0_40], %106 {strides = array<i32>} : memref<8x256xf32, #tpu.memory_space<vmem>>, vector<8x256xf32>,
    %c1_i32_41 = arith.constant 1 : i32
    %111 = arith.cmpi eq, %arg1, %c1_i32_41 : i32
    %112 = arith.extui %111 : i1 to i32
    %c0_i32_42 = arith.constant 0 : i32
    %113 = arith.cmpi ne, %112, %c0_i32_42 : i32
    scf.if %113 {
      %114 = arith.truncf %108 : vector<8x256xf32> to vector<8x256xbf16>
      %c0_43 = arith.constant 0 : index
      %c0_44 = arith.constant 0 : index
      %115 = vector.load %arg6[%c0_43, %c0_44] : memref<256x128xbf16, #tpu.memory_space<vmem>>, vector<256x128xbf16>
      %cst_45 = arith.constant dense<0.000000e+00> : vector<8x128xf32>
      %116 = tpu.matmul %114, %115, %cst_45 {dimension_numbers = #tpu.dot_dimension_numbers<[1], [0], [0], [1], [0, 0, 1, 1], [], []>} : vector<8x256xbf16>, vector<256x128xbf16>, vector<8x128xf32> -> vector<8x128xf32>
      %c0_46 = arith.constant 0 : index
      %c0_47 = arith.constant 0 : index
      %117 = vector.load %arg7[%c0_46, %c0_47] : memref<1x128xf32, #tpu.memory_space<vmem>>, vector<1x128xf32>
      %118 = vector.broadcast %117 : vector<1x128xf32> to vector<8x128xf32>
      %119 = arith.addf %116, %118 : vector<8x128xf32>
      %c0_48 = arith.constant 0 : index
      %c0_49 = arith.constant 0 : index
      %c0_50 = arith.constant 0 : index
      %120 = vector.load %arg8[%c0_48, %c0_49, %c0_50] : memref<1x8x128xf32, #tpu.memory_space<vmem>>, vector<1x8x128xf32>
      %121 = vector.shape_cast %120 : vector<1x8x128xf32> to vector<8x128xf32>
      %122 = vector.shape_cast %119 : vector<8x128xf32> to vector<1x8x128xf32>
      tpu.vector_store %arg8[%c0_48, %c0_49, %c0_50], %122 {strides = array<i32>} : memref<1x8x128xf32, #tpu.memory_space<vmem>>, vector<1x8x128xf32>,
    } else {
    }
    return
  }
  func.func @transform_0(%arg0: i32, %arg1: i32) -> (i32, i32, i32) {
    %c0_i32 = arith.constant 0 : i32
    %c0_i32_0 = arith.constant 0 : i32
    return %arg0, %arg1, %c0_i32 : i32, i32, i32
  }
  func.func @transform_1(%arg0: i32, %arg1: i32) -> (i32, i32) {
    %c0_i32 = arith.constant 0 : i32
    %c0_i32_0 = arith.constant 0 : i32
    %c0_i32_1 = arith.constant 0 : i32
    return %c0_i32, %c0_i32_0 : i32, i32
  }
  func.func @transform_2(%arg0: i32, %arg1: i32) -> (i32, i32) {
    %c0_i32 = arith.constant 0 : i32
    %c0_i32_0 = arith.constant 0 : i32
    %c0_i32_1 = arith.constant 0 : i32
    return %c0_i32, %c0_i32_0 : i32, i32
  }
  func.func @transform_3(%arg0: i32, %arg1: i32) -> (i32, i32) {
    %c0_i32 = arith.constant 0 : i32
    %c0_i32_0 = arith.constant 0 : i32
    %c0_i32_1 = arith.constant 0 : i32
    return %c0_i32, %c0_i32_0 : i32, i32
  }
  func.func @transform_4(%arg0: i32, %arg1: i32) -> (i32, i32) {
    %c0_i32 = arith.constant 0 : i32
    %c0_i32_0 = arith.constant 0 : i32
    %c0_i32_1 = arith.constant 0 : i32
    return %c0_i32, %c0_i32_0 : i32, i32
  }
  func.func @transform_5(%arg0: i32, %arg1: i32) -> (i32, i32) {
    %c0_i32 = arith.constant 0 : i32
    %c0_i32_0 = arith.constant 0 : i32
    %c0_i32_1 = arith.constant 0 : i32
    return %c0_i32, %c0_i32_0 : i32, i32
  }
  func.func @transform_6(%arg0: i32, %arg1: i32) -> (i32, i32, i32) {
    %c0_i32 = arith.constant 0 : i32
    %c0_i32_0 = arith.constant 0 : i32
    %c0_i32_1 = arith.constant 0 : i32
    return %arg0, %c0_i32, %c0_i32_0 : i32, i32, i32
  }
}

</mosaic_0001>

<llo_original>
// kernel: tpu_custom_call.1
$region0: #{tpu_custom_call.1}
  #allocation0 [shape = 'u32[]', space=smem, size = 0x4, offset = 0x4, fixed_abs, tag = 'smem constant byte address 0x4 - core index']
  #allocation1 [shape = 'u32[144,128]{1,0:T(1,128)}', space=vmem, size = 0x12000, scoped, tag = 'internal scratch']
  #allocation2 [shape = 'f32[32,1024]{1,0:T(8,128)}', space=vmem, size = 0x20000, scoped, tag = 'scratch operand']
  #allocation3 [shape = 'f32[8,256]{1,0:T(8,128)}', space=vmem, size = 0x2000, scoped, tag = 'scratch operand']
  #allocation4 [shape = 'f32[8,256]{1,0:T(8,128)}', space=vmem, size = 0x2000, scoped, tag = 'scratch operand']
  %s0 = inlined_call_operand.vmem [shape: bf16[1,64,32], index: 0, kind: input, shape index: {}]
  %s1 = inlined_call_operand.hbm [shape: bf16[32,1024], index: 1, kind: input, shape index: {}]
  %s2 = inlined_call_operand.hbm [shape: bf16[256,1024], index: 2, kind: input, shape index: {}]
  %s3 = inlined_call_operand.vmem [shape: f32[1,1024], index: 3, kind: input, shape index: {}]
  %s4 = inlined_call_operand.hbm [shape: bf16[256,128], index: 4, kind: input, shape index: {}]
  %s5 = inlined_call_operand.vmem [shape: f32[1,128], index: 5, kind: input, shape index: {}]
  %s6 = inlined_call_operand.hbm [shape: f32[1,8,128], index: 6, kind: output, shape index: {}]
  %s7 = sld [smem:[#allocation0]]
  $region77: #{tpu_custom_call.1} parent=0
    _
  %s9 = ssub.s32 1, %s7
  %s10 = scalar_select 0, %s9, %s7
  $region1: #{tpu_custom_call.1} parent=0
    #allocation5 [shape = 'u8[65536]{0}', space=vmem, size = 0x10000, scoped, tag = 'input window, operand 1, single buffered']
    #allocation6 [shape = 's32[2]{0}', space=sflag, size = 0x8, scoped, tag = 'scoped memory for tpu_custom_call.1']
    #allocation7 [shape = 's32[2]{0}', space=sflag, size = 0x8, scoped, tag = 'scoped memory for tpu_custom_call.1']
    #allocation8 [shape = 'u8[524288]{0}', space=vmem, size = 0x80000, scoped, tag = 'input window, operand 2, single buffered']
    #allocation9 [shape = 's32[1]{0}', space=sflag, size = 0x4, scoped, tag = 'scoped memory for tpu_custom_call.1']
    #allocation10 [shape = 'u8[65536]{0}', space=vmem, size = 0x10000, scoped, tag = 'input window, operand 4, single buffered']
    #allocation11 [shape = 'u8[4096]{0}', space=vmem, size = 0x1000, scoped, tag = 'output window, operand 0, single buffered']
    %11 = vsyncpa [#allocation6], 0
    %12 = vsyncpa [#allocation9], 0
    %13 = vsyncpa [#allocation7], 0
    loop: start=0, step=1, limit=4
    $region2: #{tpu_custom_call.1} parent=1 // loop_pre_header
      _
    $region3: #{tpu_custom_call.1} parent=1 // loop_header
      %s15 = sphi 0, %s19
      %p16 = scmp.ge.s32.totalorder %s15, 4
      %s22 = sphi 0, %s34
      %s23 = sphi 0, %s30
      %s24 = sphi 0, %s22
      %s25 = sphi 0, %s23
      %s26 = sphi 0, %s24
      %s27 = sphi 0, %s25
      %s39 = sphi 0, %s41
      %s42 = sphi 0, %s39
      %s43 = sphi 0, %s42
      %s59 = sphi 0, %s43
      %s63 = sphi 0, %s63
      %s65 = sphi 0, %s63
      %s66 = sphi 0, %s65
      %s80 = sphi 0, %s66
      %s84 = sphi 0, %s84
      %s86 = sphi 0, %s84
      %s87 = sphi 0, %s86
      %s101 = sphi 0, %s87
      %s105 = sphi 0, %s105
      %s107 = sphi 0, %s105
      %s108 = sphi 0, %s107
      %s122 = sphi 0, %s108
      %s126 = sphi 0, %s126
      %s128 = sphi 0, %s126
      %s129 = sphi 0, %s128
      %s143 = sphi 0, %s129
      %s147 = sphi 0, %s147
      %s149 = sphi 0, %s147
      %s150 = sphi 0, %s149
      %s164 = sphi 0, %s150
      %s170 = sphi 0, %s172
      %s173 = sphi 0, %s170
      %s174 = sphi 0, %s173
      %s190 = sphi 0, %s174
    $region4: #{tpu_custom_call.1} parent=1 // loop_header_branch
      %18 = sbr.rel (%p16) target = $region8
    $region5: #{tpu_custom_call.1} parent=1 // loop_body
      %s20 = ssub.s32 %s15, 1
      %s21 = ssub.s32 %s15, 2
      %s28 = sadd.s32 1, %s23
      %p29 = scmp.ge.s32.totalorder %s28, 2
      %s30 = scalar_select %p29, 0, %s28
      %s31 = sadd.s32 1, %s22
      %s32 = scalar_select %p29, %s31, %s22
      %p33 = scmp.ge.s32.totalorder %s32, 1
      %s34 = scalar_select %p33, 0, %s32
      %s35 = ssub.s32 %s22, %s34
      %s36 = ssub.s32 %s23, %s30
      %s37 = sor.u32 %s35, %s36
      %p38 = scmp.eq.s32.totalorder %s37, 0
      %s40 = sadd.s32 %s39, 1
      %s41 = scalar_select %p38, %s39, %s40
      %p44 = pneg %p38
      %p45 = scmp.eq.s32.totalorder %s15, 1
      %p46 = por %p44, %p45
      %p47 = scmp.ne.s32.totalorder %s39, %s42
      %p48 = scmp.eq.s32.totalorder %s15, 0
      %p49 = por %p47, %p48
      %p50 = scmp.ne.s32.totalorder %s39, %s42
      %p51 = scmp.eq.s32.totalorder %s20, 1
      %p52 = por %p50, %p51
      %p53 = scmp.ne.s32.totalorder %s42, %s43
      %p54 = scmp.eq.s32.totalorder %s20, 0
      %p55 = por %p53, %p54
      %p56 = scmp.ne.s32.totalorder %s42, %s43
      %p57 = scmp.eq.s32.totalorder %s21, 1
      %p58 = por %p56, %p57
      %p60 = scmp.ne.s32.totalorder %s43, %s59
      %p61 = scmp.eq.s32.totalorder %s21, 0
      %p62 = por %p60, %p61
      %s64 = sadd.s32 %s63, 1
      %p67 = scmp.eq.s32.totalorder %s15, 1
      %p68 = scmp.ne.s32.totalorder %s63, %s65
      %p69 = scmp.eq.s32.totalorder %s15, 0
      %p70 = por %p68, %p69
      %p71 = scmp.ne.s32.totalorder %s63, %s65
      %p72 = scmp.eq.s32.totalorder %s20, 1
      %p73 = por %p71, %p72
      %p74 = scmp.ne.s32.totalorder %s65, %s66
      %p75 = scmp.eq.s32.totalorder %s20, 0
      %p76 = por %p74, %p75
      %p77 = scmp.ne.s32.totalorder %s65, %s66
      %p78 = scmp.eq.s32.totalorder %s21, 1
      %p79 = por %p77, %p78
      %p81 = scmp.ne.s32.totalorder %s66, %s80
      %p82 = scmp.eq.s32.totalorder %s21, 0
      %p83 = por %p81, %p82
      %s85 = sadd.s32 %s84, 1
      %p88 = scmp.eq.s32.totalorder %s15, 1
      %p89 = scmp.ne.s32.totalorder %s84, %s86
      %p90 = scmp.eq.s32.totalorder %s15, 0
      %p91 = por %p89, %p90
      %p92 = scmp.ne.s32.totalorder %s84, %s86
      %p93 = scmp.eq.s32.totalorder %s20, 1
      %p94 = por %p92, %p93
      %p95 = scmp.ne.s32.totalorder %s86, %s87
      %p96 = scmp.eq.s32.totalorder %s20, 0
      %p97 = por %p95, %p96
      %p98 = scmp.ne.s32.totalorder %s86, %s87
      %p99 = scmp.eq.s32.totalorder %s21, 1
      %p100 = por %p98, %p99
      %p102 = scmp.ne.s32.totalorder %s87, %s101
      %p103 = scmp.eq.s32.totalorder %s21, 0
      %p104 = por %p102, %p103
      %s106 = sadd.s32 %s105, 1
      %p109 = scmp.eq.s32.totalorder %s15, 1
      %p110 = scmp.ne.s32.totalorder %s105, %s107
      %p111 = scmp.eq.s32.totalorder %s15, 0
      %p112 = por %p110, %p111
      %p113 = scmp.ne.s32.totalorder %s105, %s107
      %p114 = scmp.eq.s32.totalorder %s20, 1
      %p115 = por %p113, %p114
      %p116 = scmp.ne.s32.totalorder %s107, %s108
      %p117 = scmp.eq.s32.totalorder %s20, 0
      %p118 = por %p116, %p117
      %p119 = scmp.ne.s32.totalorder %s107, %s108
      %p120 = scmp.eq.s32.totalorder %s21, 1
      %p121 = por %p119, %p120
      %p123 = scmp.ne.s32.totalorder %s108, %s122
      %p124 = scmp.eq.s32.totalorder %s21, 0
      %p125 = por %p123, %p124
      %s127 = sadd.s32 %s126, 1
      %p130 = scmp.eq.s32.totalorder %s15, 1
      %p131 = scmp.ne.s32.totalorder %s126, %s128
      %p132 = scmp.eq.s32.totalorder %s15, 0
      %p133 = por %p131, %p132
      %p134 = scmp.ne.s32.totalorder %s126, %s128
      %p135 = scmp.eq.s32.totalorder %s20, 1
      %p136 = por %p134, %p135
      %p137 = scmp.ne.s32.totalorder %s128, %s129
      %p138 = scmp.eq.s32.totalorder %s20, 0
      %p139 = por %p137, %p138
      %p140 = scmp.ne.s32.totalorder %s128, %s129
      %p141 = scmp.eq.s32.totalorder %s21, 1
      %p142 = por %p140, %p141
      %p144 = scmp.ne.s32.totalorder %s129, %s143
      %p145 = scmp.eq.s32.totalorder %s21, 0
      %p146 = por %p144, %p145
      %s148 = sadd.s32 %s147, 1
      %p151 = scmp.eq.s32.totalorder %s15, 1
      %p152 = scmp.ne.s32.totalorder %s147, %s149
      %p153 = scmp.eq.s32.totalorder %s15, 0
      %p154 = por %p152, %p153
      %p155 = scmp.ne.s32.totalorder %s147, %s149
      %p156 = scmp.eq.s32.totalorder %s20, 1
      %p157 = por %p155, %p156
      %p158 = scmp.ne.s32.totalorder %s149, %s150
      %p159 = scmp.eq.s32.totalorder %s20, 0
      %p160 = por %p158, %p159
      %p161 = scmp.ne.s32.totalorder %s149, %s150
      %p162 = scmp.eq.s32.totalorder %s21, 1
      %p163 = por %p161, %p162
      %p165 = scmp.ne.s32.totalorder %s150, %s164
      %p166 = scmp.eq.s32.totalorder %s21, 0
      %p167 = por %p165, %p166
      %s168 = ssub.s32 %s22, %s34
      %p169 = scmp.eq.s32.totalorder %s168, 0
      %s171 = sadd.s32 %s170, 1
      %s172 = scalar_select %p169, %s170, %s171
      %p175 = pneg %p169
      %p176 = scmp.eq.s32.totalorder %s15, 1
      %p177 = por %p175, %p176
      %p178 = scmp.ne.s32.totalorder %s170, %s173
      %p179 = scmp.eq.s32.totalorder %s15, 0
      %p180 = por %p178, %p179
      %p181 = scmp.ne.s32.totalorder %s170, %s173
      %p182 = scmp.eq.s32.totalorder %s20, 1
      %p183 = por %p181, %p182
      %p184 = scmp.ne.s32.totalorder %s173, %s174
      %p185 = scmp.eq.s32.totalorder %s20, 0
      %p186 = por %p184, %p185
      %p187 = scmp.ne.s32.totalorder %s173, %s174
      %p188 = scmp.eq.s32.totalorder %s21, 1
      %p189 = por %p187, %p188
      %p191 = scmp.ne.s32.totalorder %s174, %s190
      %p192 = scmp.eq.s32.totalorder %s21, 0
      %p193 = por %p191, %p192
      %p194 = scmp.le.s32.totalorder 1, %s15
      %p195 = scmp.lt.s32.totalorder %s15, 3
      %p196 = pnand %p194, %p195
      %p197 = pneg %p196
      // Predicated region
      $region9: #{tpu_custom_call.1} parent=5 // pred_check
        _
      $region10: #{tpu_custom_call.1} parent=5 // pred_check_branch
        %199 = sbr.rel (%p196) target = $region12
      $region11: #{tpu_custom_call.1} parent=5 // pred_region
        %s200 = ssub.s32 %s15, 1
        // Predicated region
        $region13: #{tpu_custom_call.1} parent=11 // pred_check
          %p201 = pneg %p76
        $region14: #{tpu_custom_call.1} parent=11 // pred_check_branch
          %203 = sbr.rel (%p201) target = $region16
        $region15: #{tpu_custom_call.1} parent=11 // pred_region
          %s205 = ssub.s32 2048, 2048
          %206 = vsyncadd [#allocation6], %s205
          %s207 = sshll.u32 [#allocation5], 4
          %s208 = int_to_ptr.vmem [resolvable:$true] %s207
          %213 = dma.hbm_to_vmem [thread:$0]  %s1, 2048, %s208, [#allocation6], 512, 512, 32
        $region16: #{tpu_custom_call.1} parent=11 // pred_fallthru
          _
        // Predicated region
        $region17: #{tpu_custom_call.1} parent=11 // pred_check
          %p214 = pneg %p97
        $region18: #{tpu_custom_call.1} parent=11 // pred_check_branch
          %216 = sbr.rel (%p214) target = $region20
        $region19: #{tpu_custom_call.1} parent=11 // pred_region
          %s218 = ssub.s32 16384, 16384
          %219 = vsyncadd [#allocation9], %s218
          %s220 = sshll.u32 [#allocation8], 4
          %s221 = int_to_ptr.vmem [resolvable:$true] %s220
          %226 = dma.hbm_to_vmem [thread:$0]  %s2, 16384, %s221, [#allocation9], 512, 512, 32
        $region20: #{tpu_custom_call.1} parent=11 // pred_fallthru
          _
        // Predicated region
        $region21: #{tpu_custom_call.1} parent=11 // pred_check
          %p227 = pneg %p118
        $region22: #{tpu_custom_call.1} parent=11 // pred_check_branch
          %229 = sbr.rel (%p227) target = $region24
        $region23: #{tpu_custom_call.1} parent=11 // pred_region
          _
        $region24: #{tpu_custom_call.1} parent=11 // pred_fallthru
          _
        // Predicated region
        $region25: #{tpu_custom_call.1} parent=11 // pred_check
          %p230 = pneg %p139
        $region26: #{tpu_custom_call.1} parent=11 // pred_check_branch
          %232 = sbr.rel (%p230) target = $region28
        $region27: #{tpu_custom_call.1} parent=11 // pred_region
          %s234 = ssub.s32 2048, 2048
          %235 = vsyncadd [#allocation9], %s234
          %s236 = sshll.u32 [#allocation10], 4
          %s237 = int_to_ptr.vmem [resolvable:$true] %s236
          %242 = dma.hbm_to_vmem [thread:$0]  %s4, 2048, %s237, [#allocation9], 64, 64, 4
        $region28: #{tpu_custom_call.1} parent=11 // pred_fallthru
          _
        // Predicated region
        $region29: #{tpu_custom_call.1} parent=11 // pred_check
          %p243 = pneg %p160
        $region30: #{tpu_custom_call.1} parent=11 // pred_check_branch
          %245 = sbr.rel (%p243) target = $region32
        $region31: #{tpu_custom_call.1} parent=11 // pred_region
          _
        $region32: #{tpu_custom_call.1} parent=11 // pred_fallthru
          _
      $region12: #{tpu_custom_call.1} parent=5 // pred_fallthru
        _
      %p246 = scmp.lt.s32.totalorder %s15, 2
      // Predicated region
      $region33: #{tpu_custom_call.1} parent=5 // pred_check
        %p247 = pneg %p246
      $region34: #{tpu_custom_call.1} parent=5 // pred_check_branch
        %249 = sbr.rel (%p247) target = $region36
      $region35: #{tpu_custom_call.1} parent=5 // pred_region
        // Predicated region
        $region37: #{tpu_custom_call.1} parent=35 // pred_check
          %p250 = pneg %p49
        $region38: #{tpu_custom_call.1} parent=35 // pred_check_branch
          %252 = sbr.rel (%p250) target = $region40
        $region39: #{tpu_custom_call.1} parent=35 // pred_region
          %s253 = smul.u32 4, %s23
          %p254 = scmp.lt.s32.totalorder %s22, 0
          %s255 = scalar_select %p254, %s22, 0
          %p256 = scmp.lt.s32.totalorder %s253, 7
          %s257 = scalar_select %p256, %s253, 7
          %s258 = smul.addr %s255, 8
          %s259 = sadd.s32 %s257, %s258
          %s260 = smul.addr %s259, 4
          %s261 = scalar_lea.vmem %s0, %s260
          %s262 = smul.u32 4, %s23
        $region40: #{tpu_custom_call.1} parent=35 // pred_fallthru
          _
      $region36: #{tpu_custom_call.1} parent=5 // pred_fallthru
        _
      %p263 = scmp.le.s32.totalorder 1, %s15
      %p264 = scmp.lt.s32.totalorder %s15, 3
      %p265 = pnand %p263, %p264
      %p266 = pneg %p265
      // Predicated region
      $region41: #{tpu_custom_call.1} parent=5 // pred_check
        _
      $region42: #{tpu_custom_call.1} parent=5 // pred_check_branch
        %268 = sbr.rel (%p265) target = $region44
      $region43: #{tpu_custom_call.1} parent=5 // pred_region
        %s269 = ssub.s32 %s15, 1
        // Predicated region
        $region45: #{tpu_custom_call.1} parent=43 // pred_check
          %p270 = pneg %p76
        $region46: #{tpu_custom_call.1} parent=43 // pred_check_branch
          %272 = sbr.rel (%p270) target = $region48
        $region47: #{tpu_custom_call.1} parent=43 // pred_region
          %273 = dma.done [#allocation6], 2048
        $region48: #{tpu_custom_call.1} parent=43 // pred_fallthru
          _
        // Predicated region
        $region49: #{tpu_custom_call.1} parent=43 // pred_check
          %p274 = pneg %p97
        $region50: #{tpu_custom_call.1} parent=43 // pred_check_branch
          %276 = sbr.rel (%p274) target = $region52
        $region51: #{tpu_custom_call.1} parent=43 // pred_region
          %277 = dma.done [#allocation9], 16384
        $region52: #{tpu_custom_call.1} parent=43 // pred_fallthru
          _
        // Predicated region
        $region53: #{tpu_custom_call.1} parent=43 // pred_check
          %p278 = pneg %p139
        $region54: #{tpu_custom_call.1} parent=43 // pred_check_branch
          %280 = sbr.rel (%p278) target = $region56
        $region55: #{tpu_custom_call.1} parent=43 // pred_region
          %281 = dma.done [#allocation9], 2048
        $region56: #{tpu_custom_call.1} parent=43 // pred_fallthru
          _
        %s282 = smul.u32 4, %s25
        %p283 = scmp.lt.s32.totalorder %s24, 0
        %s284 = scalar_select %p283, %s24, 0
        %p285 = scmp.lt.s32.totalorder %s282, 7
        %s286 = scalar_select %p285, %s282, 7
        %s287 = smul.addr %s284, 8
        %s288 = sadd.s32 %s286, %s287
        %s289 = smul.addr %s288, 4
        %s290 = scalar_lea.vmem %s0, %s289
        %p291 = pneg %p55
        %p292 = pneg %p52
        %p293 = pneg %p76
        %p294 = pneg %p73
        %p295 = pneg %p97
        %p296 = pneg %p94
        %p297 = pneg %p118
        %p298 = pneg %p115
        %p299 = pneg %p139
        %p300 = pneg %p136
        %p301 = pneg %p160
        %p302 = pneg %p157
        %p303 = pneg %p186
        %p304 = pneg %p183
        %s305 = smul.u32 4, %s25
        %p306 = scmp.lt.s32.totalorder %s24, 0
        %s307 = scalar_select %p306, %s24, 0
        %p308 = scmp.lt.s32.totalorder %s305, 7
        %s309 = scalar_select %p308, %s305, 7
        %s310 = smul.addr %s307, 8
        %s311 = sadd.s32 %s309, %s310
        %s312 = smul.addr %s311, 4
        %s313 = scalar_lea.vmem %s0, %s312
        %s314 = smul.u32 4, %s25
        %p316 = scmp.eq.s32.totalorder %s25, 0
        // Predicated region
        $region57: #{tpu_custom_call.1} parent=43 // pred_check
          %p317 = pneg %p316
        $region58: #{tpu_custom_call.1} parent=43 // pred_check_branch
          %319 = sbr.rel (%p317) target = $region60
        $region59: #{tpu_custom_call.1} parent=43 // pred_region
          %320 = vst [vmem:[#allocation3] sm:$0xff] 0.0
          %321 = vst [vmem:[#allocation3 + $0x8] sm:$0xff] 0.0
          %322 = vst [vmem:[#allocation4] sm:$0xff] 0.0
          %323 = vst [vmem:[#allocation4 + $0x8] sm:$0xff] 0.0
        $region60: #{tpu_custom_call.1} parent=43 // pred_fallthru
          _
        %v324 = vld [vmem:[%s313] sm:$0xf]
        %v325 = vld [vmem:[%s313 + $0x4] sm:$0xf]
        %v326 = vld [vmem:[%s313 + $0x8] sm:$0xf]
        %v327 = vld [vmem:[%s313 + $0xc] sm:$0xf]
        %v328 = vld [vmem:[#allocation5] sm:$0xff]
        %v329 = vld [vmem:[#allocation5 + $0x8] sm:$0xff]
        %v330 = vld [vmem:[#allocation5 + $0x10] sm:$0xff]
        %v331 = vld [vmem:[#allocation5 + $0x18] sm:$0xff]
        %v332 = vld [vmem:[#allocation5 + $0x20] sm:$0xff]
        %v333 = vld [vmem:[#allocation5 + $0x28] sm:$0xff]
        %v334 = vld [vmem:[#allocation5 + $0x30] sm:$0xff]
        %v335 = vld [vmem:[#allocation5 + $0x38] sm:$0xff]
        %v336 = vld [vmem:[#allocation5 + $0x40] sm:$0xff]
        %v337 = vld [vmem:[#allocation5 + $0x48] sm:$0xff]
        %v338 = vld [vmem:[#allocation5 + $0x50] sm:$0xff]
        %v339 = vld [vmem:[#allocation5 + $0x58] sm:$0xff]
        %v340 = vld [vmem:[#allocation5 + $0x60] sm:$0xff]
        %v341 = vld [vmem:[#allocation5 + $0x68] sm:$0xff]
        %v342 = vld [vmem:[#allocation5 + $0x70] sm:$0xff]
        %v343 = vld [vmem:[#allocation5 + $0x78] sm:$0xff]
        %v344 = vld [vmem:[%s3] sm:$0xff]
        %v346 = vlaneseq
        %v347 = vshrl.u32 %v346, 7
        %v348 = vsub.s32 0, %v347
        %v349 = vrot.slane %v344, %v348
        %v350 = vlaneseq
        %v351 = vshrl.u32 %v350, 7
        %v352 = vsub.s32 1, %v351
        %v353 = vrot.slane %v344, %v352
        %v354 = vlaneseq
        %v355 = vshrl.u32 %v354, 7
        %v356 = vsub.s32 2, %v355
        %v357 = vrot.slane %v344, %v356
        %v358 = vlaneseq
        %v359 = vshrl.u32 %v358, 7
        %v360 = vsub.s32 3, %v359
        %v361 = vrot.slane %v344, %v360
        %v362 = vlaneseq
        %v363 = vshrl.u32 %v362, 7
        %v364 = vsub.s32 4, %v363
        %v365 = vrot.slane %v344, %v364
        %v366 = vlaneseq
        %v367 = vshrl.u32 %v366, 7
        %v368 = vsub.s32 5, %v367
        %v369 = vrot.slane %v344, %v368
        %v370 = vlaneseq
        %v371 = vshrl.u32 %v370, 7
        %v372 = vsub.s32 6, %v371
        %v373 = vrot.slane %v344, %v372
        %v374 = vlaneseq
        %v375 = vshrl.u32 %v374, 7
        %v376 = vsub.s32 7, %v375
        %v377 = vrot.slane %v344, %v376
        %v390 = vunpack.c.l.b16 %v324
        %v391 = vunpack.c.l.b16 %v325
        %v392 = vunpack.c.l.b16 %v326
        %v393 = vunpack.c.l.b16 %v327
        %v394 = vpack.c.b16 %v391, %v390
        %v395 = vpack.c.b16 %v393, %v392
        %v412 = vunpack.c.l.b16 %v328
        %v413 = vunpack.c.h.b16 %v328
        %v414 = vunpack.c.l.b16 %v329
        %v415 = vunpack.c.h.b16 %v329
        %v416 = vunpack.c.l.b16 %v330
        %v417 = vunpack.c.h.b16 %v330
        %v418 = vunpack.c.l.b16 %v331
        %v419 = vunpack.c.h.b16 %v331
        %v420 = vunpack.c.l.b16 %v332
        %v421 = vunpack.c.h.b16 %v332
        %v422 = vunpack.c.l.b16 %v333
        %v423 = vunpack.c.h.b16 %v333
        %v424 = vunpack.c.l.b16 %v334
        %v425 = vunpack.c.h.b16 %v334
        %v426 = vunpack.c.l.b16 %v335
        %v427 = vunpack.c.h.b16 %v335
        %v428 = vunpack.c.l.b16 %v336
        %v429 = vunpack.c.h.b16 %v336
        %v430 = vunpack.c.l.b16 %v337
        %v431 = vunpack.c.h.b16 %v337
        %v432 = vunpack.c.l.b16 %v338
        %v433 = vunpack.c.h.b16 %v338
        %v434 = vunpack.c.l.b16 %v339
        %v435 = vunpack.c.h.b16 %v339
        %v436 = vunpack.c.l.b16 %v340
        %v437 = vunpack.c.h.b16 %v340
        %v438 = vunpack.c.l.b16 %v341
        %v439 = vunpack.c.h.b16 %v341
        %v440 = vunpack.c.l.b16 %v342
        %v441 = vunpack.c.h.b16 %v342
        %v442 = vunpack.c.l.b16 %v343
        %v443 = vunpack.c.h.b16 %v343
        %v444 = vpack.c.b16 %v420, %v412
        %v445 = vpack.c.b16 %v421, %v413
        %v446 = vpack.c.b16 %v422, %v414
        %v447 = vpack.c.b16 %v423, %v415
        %v448 = vpack.c.b16 %v424, %v416
        %v449 = vpack.c.b16 %v425, %v417
        %v450 = vpack.c.b16 %v426, %v418
        %v451 = vpack.c.b16 %v427, %v419
        %v452 = vpack.c.b16 %v436, %v428
        %v453 = vpack.c.b16 %v437, %v429
        %v454 = vpack.c.b16 %v438, %v430
        %v455 = vpack.c.b16 %v439, %v431
        %v456 = vpack.c.b16 %v440, %v432
        %v457 = vpack.c.b16 %v441, %v433
        %v458 = vpack.c.b16 %v442, %v434
        %v459 = vpack.c.b16 %v443, %v435
        %vm476 = vcmask 261120
        %v478 = vsel %vm476, %v394, 0
        %v481 = vsel %vm476, %v395, 0
        %483 = vmatprep.subr.bf16.mxu0 %v445
        %484 = vmatpush1.bf16.msra.mxu0 %v444
        %485 = vmatprep.subr.bf16.mxu0 %v453
        %486 = vmatpush1.bf16.msra.mxu0 %v452
        %487 = vmatprep.subr.bf16.mxu0 0
        %488 = vmatpush1.bf16.msra.mxu0 0
        %489 = vmatprep.subr.bf16.mxu0 0
        %490 = vmatpush1.bf16.msra.mxu0 0
        %491 = vmatprep.subr.bf16.mxu0 0
        %492 = vmatpush1.bf16.msra.mxu0 0
        %493 = vmatprep.subr.bf16.mxu0 0
        %494 = vmatpush1.bf16.msra.mxu0 0
        %495 = vmatprep.subr.bf16.mxu0 0
        %496 = vmatpush1.bf16.msra.mxu0 0
        %497 = vmatprep.subr.bf16.mxu0 0
        %498 = vmatpush1.bf16.msra.mxu0 0
        %499 = vmatprep.subr.bf16.mxu0 0
        %500 = vmatpush1.bf16.msra.mxu0 0
        %501 = vmatprep.subr.bf16.mxu0 0
        %502 = vmatpush1.bf16.msra.mxu0 0
        %503 = vmatprep.subr.bf16.mxu0 0
        %504 = vmatpush1.bf16.msra.mxu0 0
        %505 = vmatprep.subr.bf16.mxu0 0
        %506 = vmatpush1.bf16.msra.mxu0 0
        %507 = vmatprep.subr.bf16.mxu0 0
        %508 = vmatpush1.bf16.msra.mxu0 0
        %509 = vmatprep.subr.bf16.mxu0 0
        %510 = vmatpush1.bf16.msra.mxu0 0
        %511 = vmatprep.subr.bf16.mxu0 0
        %512 = vmatpush1.bf16.msra.mxu0 0
        %513 = vmatprep.subr.bf16.mxu0 0
        %514 = vmatpush1.bf16.msra.mxu0 0
        %515 = vmatprep.mubr.bf16.mxu0 0
        %516 = vmatmul.mubr.bf16.gmra.mrb[0].mxu0 %v478
        %v517 = vpop.f32.mrb[0].mxu0
        %v518 = vadd.f32 %v349, %v517
        %v519 = vpop.f32.mrb[0].mxu0
        %v520 = vadd.f32 %v353, %v519
        %v521 = vpop.f32.mrb[0].mxu0
        %v522 = vadd.f32 %v349, %v521
        %v523 = vpop.f32.mrb[0].mxu0
        %v524 = vadd.f32 %v353, %v523
        %525 = vmatprep.mubr.bf16.mxu0 0
        %526 = vmatmul.mubr.bf16.gmra.mrb[0].mxu0 %v481
        %v527 = vpop.f32.mrb[0].mxu0
        %v528 = vadd.f32 %v349, %v527
        %v529 = vpop.f32.mrb[0].mxu0
        %v530 = vadd.f32 %v353, %v529
        %v531 = vpop.f32.mrb[0].mxu0
        %v532 = vadd.f32 %v349, %v531
        %v533 = vpop.f32.mrb[0].mxu0
        %v534 = vadd.f32 %v353, %v533
        %535 = vdwg.mxu0
        %536 = vmatprep.subr.bf16.mxu0 %v447
        %537 = vmatpush1.bf16.msra.mxu0 %v446
        %538 = vmatprep.subr.bf16.mxu0 %v455
        %539 = vmatpush1.bf16.msra.mxu0 %v454
        %540 = vmatprep.subr.bf16.mxu0 0
        %541 = vmatpush1.bf16.msra.mxu0 0
        %542 = vmatprep.subr.bf16.mxu0 0
        %543 = vmatpush1.bf16.msra.mxu0 0
        %544 = vmatprep.subr.bf16.mxu0 0
        %545 = vmatpush1.bf16.msra.mxu0 0
        %546 = vmatprep.subr.bf16.mxu0 0
        %547 = vmatpush1.bf16.msra.mxu0 0
        %548 = vmatprep.subr.bf16.mxu0 0
        %549 = vmatpush1.bf16.msra.mxu0 0
        %550 = vmatprep.subr.bf16.mxu0 0
        %551 = vmatpush1.bf16.msra.mxu0 0
        %552 = vmatprep.subr.bf16.mxu0 0
        %553 = vmatpush1.bf16.msra.mxu0 0
        %554 = vmatprep.subr.bf16.mxu0 0
        %555 = vmatpush1.bf16.msra.mxu0 0
        %556 = vmatprep.subr.bf16.mxu0 0
        %557 = vmatpush1.bf16.msra.mxu0 0
        %558 = vmatprep.subr.bf16.mxu0 0
        %559 = vmatpush1.bf16.msra.mxu0 0
        %560 = vmatprep.subr.bf16.mxu0 0
        %561 = vmatpush1.bf16.msra.mxu0 0
        %562 = vmatprep.subr.bf16.mxu0 0
        %563 = vmatpush1.bf16.msra.mxu0 0
        %564 = vmatprep.subr.bf16.mxu0 0
        %565 = vmatpush1.bf16.msra.mxu0 0
        %566 = vmatprep.subr.bf16.mxu0 0
        %567 = vmatpush1.bf16.msra.mxu0 0
        %568 = vmatprep.mubr.bf16.mxu0 0
        %569 = vmatmul.mubr.bf16.gmra.mrb[0].mxu0 %v478
        %v570 = vpop.f32.mrb[0].mxu0
        %v571 = vadd.f32 %v357, %v570
        %v572 = vpop.f32.mrb[0].mxu0
        %v573 = vadd.f32 %v361, %v572
        %v574 = vpop.f32.mrb[0].mxu0
        %v575 = vadd.f32 %v357, %v574
        %v576 = vpop.f32.mrb[0].mxu0
        %v577 = vadd.f32 %v361, %v576
        %578 = vmatprep.mubr.bf16.mxu0 0
        %579 = vmatmul.mubr.bf16.gmra.mrb[0].mxu0 %v481
        %v580 = vpop.f32.mrb[0].mxu0
        %v581 = vadd.f32 %v357, %v580
        %v582 = vpop.f32.mrb[0].mxu0
        %v583 = vadd.f32 %v361, %v582
        %v584 = vpop.f32.mrb[0].mxu0
        %v585 = vadd.f32 %v357, %v584
        %v586 = vpop.f32.mrb[0].mxu0
        %v587 = vadd.f32 %v361, %v586
        %588 = vdwg.mxu0
        %589 = vmatprep.subr.bf16.mxu0 %v449
        %590 = vmatpush1.bf16.msra.mxu0 %v448
        %591 = vmatprep.subr.bf16.mxu0 %v457
        %592 = vmatpush1.bf16.msra.mxu0 %v456
        %593 = vmatprep.subr.bf16.mxu0 0
        %594 = vmatpush1.bf16.msra.mxu0 0
        %595 = vmatprep.subr.bf16.mxu0 0
        %596 = vmatpush1.bf16.msra.mxu0 0
        %597 = vmatprep.subr.bf16.mxu0 0
        %598 = vmatpush1.bf16.msra.mxu0 0
        %599 = vmatprep.subr.bf16.mxu0 0
        %600 = vmatpush1.bf16.msra.mxu0 0
        %601 = vmatprep.subr.bf16.mxu0 0
        %602 = vmatpush1.bf16.msra.mxu0 0
        %603 = vmatprep.subr.bf16.mxu0 0
        %604 = vmatpush1.bf16.msra.mxu0 0
        %605 = vmatprep.subr.bf16.mxu0 0
        %606 = vmatpush1.bf16.msra.mxu0 0
        %607 = vmatprep.subr.bf16.mxu0 0
        %608 = vmatpush1.bf16.msra.mxu0 0
        %609 = vmatprep.subr.bf16.mxu0 0
        %610 = vmatpush1.bf16.msra.mxu0 0
        %611 = vmatprep.subr.bf16.mxu0 0
        %612 = vmatpush1.bf16.msra.mxu0 0
        %613 = vmatprep.subr.bf16.mxu0 0
        %614 = vmatpush1.bf16.msra.mxu0 0
        %615 = vmatprep.subr.bf16.mxu0 0
        %616 = vmatpush1.bf16.msra.mxu0 0
        %617 = vmatprep.subr.bf16.mxu0 0
        %618 = vmatpush1.bf16.msra.mxu0 0
        %619 = vmatprep.subr.bf16.mxu0 0
        %620 = vmatpush1.bf16.msra.mxu0 0
        %621 = vmatprep.mubr.bf16.mxu0 0
        %622 = vmatmul.mubr.bf16.gmra.mrb[0].mxu0 %v478
        %v623 = vpop.f32.mrb[0].mxu0
        %v624 = vadd.f32 %v365, %v623
        %v625 = vpop.f32.mrb[0].mxu0
        %v626 = vadd.f32 %v369, %v625
        %v627 = vpop.f32.mrb[0].mxu0
        %v628 = vadd.f32 %v365, %v627
        %v629 = vpop.f32.mrb[0].mxu0
        %v630 = vadd.f32 %v369, %v629
        %631 = vmatprep.mubr.bf16.mxu0 0
        %632 = vmatmul.mubr.bf16.gmra.mrb[0].mxu0 %v481
        %v633 = vpop.f32.mrb[0].mxu0
        %v634 = vadd.f32 %v365, %v633
        %v635 = vpop.f32.mrb[0].mxu0
        %v636 = vadd.f32 %v369, %v635
        %v637 = vpop.f32.mrb[0].mxu0
        %v638 = vadd.f32 %v365, %v637
        %v639 = vpop.f32.mrb[0].mxu0
        %v640 = vadd.f32 %v369, %v639
        %641 = vdwg.mxu0
        %642 = vmatprep.subr.bf16.mxu0 %v451
        %643 = vmatpush1.bf16.msra.mxu0 %v450
        %644 = vmatprep.subr.bf16.mxu0 %v459
        %645 = vmatpush1.bf16.msra.mxu0 %v458
        %646 = vmatprep.subr.bf16.mxu0 0
        %647 = vmatpush1.bf16.msra.mxu0 0
        %648 = vmatprep.subr.bf16.mxu0 0
        %649 = vmatpush1.bf16.msra.mxu0 0
        %650 = vmatprep.subr.bf16.mxu0 0
        %651 = vmatpush1.bf16.msra.mxu0 0
        %652 = vmatprep.subr.bf16.mxu0 0
        %653 = vmatpush1.bf16.msra.mxu0 0
        %654 = vmatprep.subr.bf16.mxu0 0
        %655 = vmatpush1.bf16.msra.mxu0 0
        %656 = vmatprep.subr.bf16.mxu0 0
        %657 = vmatpush1.bf16.msra.mxu0 0
        %658 = vmatprep.subr.bf16.mxu0 0
        %659 = vmatpush1.bf16.msra.mxu0 0
        %660 = vmatprep.subr.bf16.mxu0 0
        %661 = vmatpush1.bf16.msra.mxu0 0
        %662 = vmatprep.subr.bf16.mxu0 0
        %663 = vmatpush1.bf16.msra.mxu0 0
        %664 = vmatprep.subr.bf16.mxu0 0
        %665 = vmatpush1.bf16.msra.mxu0 0
        %666 = vmatprep.subr.bf16.mxu0 0
        %667 = vmatpush1.bf16.msra.mxu0 0
        %668 = vmatprep.subr.bf16.mxu0 0
        %669 = vmatpush1.bf16.msra.mxu0 0
        %670 = vmatprep.subr.bf16.mxu0 0
        %671 = vmatpush1.bf16.msra.mxu0 0
        %672 = vmatprep.subr.bf16.mxu0 0
        %673 = vmatpush1.bf16.msra.mxu0 0
        %674 = vmatprep.mubr.bf16.mxu0 0
        %675 = vmatmul.mubr.bf16.gmra.mrb[0].mxu0 %v478
        %v676 = vpop.f32.mrb[0].mxu0
        %v677 = vadd.f32 %v373, %v676
        %v678 = vpop.f32.mrb[0].mxu0
        %v679 = vadd.f32 %v377, %v678
        %v680 = vpop.f32.mrb[0].mxu0
        %v681 = vadd.f32 %v373, %v680
        %v682 = vpop.f32.mrb[0].mxu0
        %v683 = vadd.f32 %v377, %v682
        %684 = vmatprep.mubr.bf16.mxu0 0
        %685 = vmatmul.mubr.bf16.gmra.mrb[0].mxu0 %v481
        %v686 = vpop.f32.mrb[0].mxu0
        %v687 = vadd.f32 %v373, %v686
        %v688 = vpop.f32.mrb[0].mxu0
        %v689 = vadd.f32 %v377, %v688
        %v690 = vpop.f32.mrb[0].mxu0
        %v691 = vadd.f32 %v373, %v690
        %v692 = vpop.f32.mrb[0].mxu0
        %v693 = vadd.f32 %v377, %v692
        %694 = vdwg.mxu0
        %695 = vst [vmem:[#allocation2] sm:$0xff] %v518
        %696 = vst [vmem:[#allocation2 + $0x8] sm:$0xff] %v520
        %697 = vst [vmem:[#allocation2 + $0x10] sm:$0xff] %v571
        %698 = vst [vmem:[#allocation2 + $0x18] sm:$0xff] %v573
        %699 = vst [vmem:[#allocation2 + $0x20] sm:$0xff] %v624
        %700 = vst [vmem:[#allocation2 + $0x28] sm:$0xff] %v626
        %701 = vst [vmem:[#allocation2 + $0x30] sm:$0xff] %v677
        %702 = vst [vmem:[#allocation2 + $0x38] sm:$0xff] %v679
        %703 = vst [vmem:[#allocation2 + $0x40] sm:$0xff] %v522
        %704 = vst [vmem:[#allocation2 + $0x48] sm:$0xff] %v524
        %705 = vst [vmem:[#allocation2 + $0x50] sm:$0xff] %v575
        %706 = vst [vmem:[#allocation2 + $0x58] sm:$0xff] %v577
        %707 = vst [vmem:[#allocation2 + $0x60] sm:$0xff] %v628
        %708 = vst [vmem:[#allocation2 + $0x68] sm:$0xff] %v630
        %709 = vst [vmem:[#allocation2 + $0x70] sm:$0xff] %v681
        %710 = vst [vmem:[#allocation2 + $0x78] sm:$0xff] %v683
        %711 = vst [vmem:[#allocation2 + $0x80] sm:$0xff] %v528
        %712 = vst [vmem:[#allocation2 + $0x88] sm:$0xff] %v530
        %713 = vst [vmem:[#allocation2 + $0x90] sm:$0xff] %v581
        %714 = vst [vmem:[#allocation2 + $0x98] sm:$0xff] %v583
        %715 = vst [vmem:[#allocation2 + $0xa0] sm:$0xff] %v634
        %716 = vst [vmem:[#allocation2 + $0xa8] sm:$0xff] %v636
        %717 = vst [vmem:[#allocation2 + $0xb0] sm:$0xff] %v687
        %718 = vst [vmem:[#allocation2 + $0xb8] sm:$0xff] %v689
        %719 = vst [vmem:[#allocation2 + $0xc0] sm:$0xff] %v532
        %720 = vst [vmem:[#allocation2 + $0xc8] sm:$0xff] %v534
        %721 = vst [vmem:[#allocation2 + $0xd0] sm:$0xff] %v585
        %722 = vst [vmem:[#allocation2 + $0xd8] sm:$0xff] %v587
        %723 = vst [vmem:[#allocation2 + $0xe0] sm:$0xff] %v638
        %724 = vst [vmem:[#allocation2 + $0xe8] sm:$0xff] %v640
        %725 = vst [vmem:[#allocation2 + $0xf0] sm:$0xff] %v691
        %726 = vst [vmem:[#allocation2 + $0xf8] sm:$0xff] %v693
        %v727 = vld [vmem:[#allocation3] sm:$0xff]
        %v728 = vld [vmem:[#allocation3 + $0x8] sm:$0xff]
        %v729 = vld [vmem:[#allocation4] sm:$0xff]
        %v730 = vld [vmem:[#allocation4 + $0x8] sm:$0xff]
        %s731 = smul.u32 0, 8
        %s732 = smul.addr %s731, 8
        %s733 = scalar_lea.vmem [#allocation2], %s732
        %v734 = vld [vmem:[%s733] sm:$0xff]
        %v735 = vld [vmem:[%s733 + $0x8] sm:$0xff]
        %v736 = vld [vmem:[%s733 + $0x10] sm:$0xff]
        %v737 = vld [vmem:[%s733 + $0x18] sm:$0xff]
        %v738 = vld [vmem:[%s733 + $0x20] sm:$0xff]
        %v739 = vld [vmem:[%s733 + $0x28] sm:$0xff]
        %v740 = vld [vmem:[%s733 + $0x30] sm:$0xff]
        %v741 = vld [vmem:[%s733 + $0x38] sm:$0xff]
        %v742 = vpack.c.bf16 %v727, %v727
        %v743 = vpack.c.bf16 %v728, %v728
        %v744 = vld [vmem:[#allocation8] sm:$0xff]
        %v745 = vld [vmem:[#allocation8 + $0x8] sm:$0xff]
        %v746 = vld [vmem:[#allocation8 + $0x10] sm:$0xff]
        %v747 = vld [vmem:[#allocation8 + $0x18] sm:$0xff]
        %v748 = vld [vmem:[#allocation8 + $0x20] sm:$0xff]
        %v749 = vld [vmem:[#allocation8 + $0x28] sm:$0xff]
        %v750 = vld [vmem:[#allocation8 + $0x30] sm:$0xff]
        %v751 = vld [vmem:[#allocation8 + $0x38] sm:$0xff]
        %v752 = vld [vmem:[#allocation8 + $0x40] sm:$0xff]
        %v753 = vld [vmem:[#allocation8 + $0x48] sm:$0xff]
        %v754 = vld [vmem:[#allocation8 + $0x50] sm:$0xff]
        %v755 = vld [vmem:[#allocation8 + $0x58] sm:$0xff]
        %v756 = vld [vmem:[#allocation8 + $0x60] sm:$0xff]
        %v757 = vld [vmem:[#allocation8 + $0x68] sm:$0xff]
        %v758 = vld [vmem:[#allocation8 + $0x70] sm:$0xff]
        %v759 = vld [vmem:[#allocation8 + $0x78] sm:$0xff]
        %v760 = vld [vmem:[#allocation8 + $0x80] sm:$0xff]
        %v761 = vld [vmem:[#allocation8 + $0x88] sm:$0xff]
        %v762 = vld [vmem:[#allocation8 + $0x90] sm:$0xff]
        %v763 = vld [vmem:[#allocation8 + $0x98] sm:$0xff]
        %v764 = vld [vmem:[#allocation8 + $0xa0] sm:$0xff]
        %v765 = vld [vmem:[#allocation8 + $0xa8] sm:$0xff]
        %v766 = vld [vmem:[#allocation8 + $0xb0] sm:$0xff]
        %v767 = vld [vmem:[#allocation8 + $0xb8] sm:$0xff]
        %v768 = vld [vmem:[#allocation8 + $0xc0] sm:$0xff]
        %v769 = vld [vmem:[#allocation8 + $0xc8] sm:$0xff]
        %v770 = vld [vmem:[#allocation8 + $0xd0] sm:$0xff]
        %v771 = vld [vmem:[#allocation8 + $0xd8] sm:$0xff]
        %v772 = vld [vmem:[#allocation8 + $0xe0] sm:$0xff]
        %v773 = vld [vmem:[#allocation8 + $0xe8] sm:$0xff]
        %v774 = vld [vmem:[#allocation8 + $0xf0] sm:$0xff]
        %v775 = vld [vmem:[#allocation8 + $0xf8] sm:$0xff]
        %v776 = vld [vmem:[#allocation8 + $0x100] sm:$0xff]
        %v777 = vld [vmem:[#allocation8 + $0x108] sm:$0xff]
        %v778 = vld [vmem:[#allocation8 + $0x110] sm:$0xff]
        %v779 = vld [vmem:[#allocation8 + $0x118] sm:$0xff]
        %v780 = vld [vmem:[#allocation8 + $0x120] sm:$0xff]
        %v781 = vld [vmem:[#allocation8 + $0x128] sm:$0xff]
        %v782 = vld [vmem:[#allocation8 + $0x130] sm:$0xff]
        %v783 = vld [vmem:[#allocation8 + $0x138] sm:$0xff]
        %v784 = vld [vmem:[#allocation8 + $0x140] sm:$0xff]
        %v785 = vld [vmem:[#allocation8 + $0x148] sm:$0xff]
        %v786 = vld [vmem:[#allocation8 + $0x150] sm:$0xff]
        %v787 = vld [vmem:[#allocation8 + $0x158] sm:$0xff]
        %v788 = vld [vmem:[#allocation8 + $0x160] sm:$0xff]
        %v789 = vld [vmem:[#allocation8 + $0x168] sm:$0xff]
        %v790 = vld [vmem:[#allocation8 + $0x170] sm:$0xff]
        %v791 = vld [vmem:[#allocation8 + $0x178] sm:$0xff]
        %v792 = vld [vmem:[#allocation8 + $0x180] sm:$0xff]
        %v793 = vld [vmem:[#allocation8 + $0x188] sm:$0xff]
        %v794 = vld [vmem:[#allocation8 + $0x190] sm:$0xff]
        %v795 = vld [vmem:[#allocation8 + $0x198] sm:$0xff]
        %v796 = vld [vmem:[#allocation8 + $0x1a0] sm:$0xff]
        %v797 = vld [vmem:[#allocation8 + $0x1a8] sm:$0xff]
        %v798 = vld [vmem:[#allocation8 + $0x1b0] sm:$0xff]
        %v799 = vld [vmem:[#allocation8 + $0x1b8] sm:$0xff]
        %v800 = vld [vmem:[#allocation8 + $0x1c0] sm:$0xff]
        %v801 = vld [vmem:[#allocation8 + $0x1c8] sm:$0xff]
        %v802 = vld [vmem:[#allocation8 + $0x1d0] sm:$0xff]
        %v803 = vld [vmem:[#allocation8 + $0x1d8] sm:$0xff]
        %v804 = vld [vmem:[#allocation8 + $0x1e0] sm:$0xff]
        %v805 = vld [vmem:[#allocation8 + $0x1e8] sm:$0xff]
        %v806 = vld [vmem:[#allocation8 + $0x1f0] sm:$0xff]
        %v807 = vld [vmem:[#allocation8 + $0x1f8] sm:$0xff]
        %v808 = vld [vmem:[#allocation8 + $0x200] sm:$0xff]
        %v809 = vld [vmem:[#allocation8 + $0x208] sm:$0xff]
        %v810 = vld [vmem:[#allocation8 + $0x210] sm:$0xff]
        %v811 = vld [vmem:[#allocation8 + $0x218] sm:$0xff]
        %v812 = vld [vmem:[#allocation8 + $0x220] sm:$0xff]
        %v813 = vld [vmem:[#allocation8 + $0x228] sm:$0xff]
        %v814 = vld [vmem:[#allocation8 + $0x230] sm:$0xff]
        %v815 = vld [vmem:[#allocation8 + $0x238] sm:$0xff]
        %v816 = vld [vmem:[#allocation8 + $0x240] sm:$0xff]
        %v817 = vld [vmem:[#allocation8 + $0x248] sm:$0xff]
        %v818 = vld [vmem:[#allocation8 + $0x250] sm:$0xff]
        %v819 = vld [vmem:[#allocation8 + $0x258] sm:$0xff]
        %v820 = vld [vmem:[#allocation8 + $0x260] sm:$0xff]
        %v821 = vld [vmem:[#allocation8 + $0x268] sm:$0xff]
        %v822 = vld [vmem:[#allocation8 + $0x270] sm:$0xff]
        %v823 = vld [vmem:[#allocation8 + $0x278] sm:$0xff]
        %v824 = vld [vmem:[#allocation8 + $0x280] sm:$0xff]
        %v825 = vld [vmem:[#allocation8 + $0x288] sm:$0xff]
        %v826 = vld [vmem:[#allocation8 + $0x290] sm:$0xff]
        %v827 = vld [vmem:[#allocation8 + $0x298] sm:$0xff]
        %v828 = vld [vmem:[#allocation8 + $0x2a0] sm:$0xff]
        %v829 = vld [vmem:[#allocation8 + $0x2a8] sm:$0xff]
        %v830 = vld [vmem:[#allocation8 + $0x2b0] sm:$0xff]
        %v831 = vld [vmem:[#allocation8 + $0x2b8] sm:$0xff]
        %v832 = vld [vmem:[#allocation8 + $0x2c0] sm:$0xff]
        %v833 = vld [vmem:[#allocation8 + $0x2c8] sm:$0xff]
        %v834 = vld [vmem:[#allocation8 + $0x2d0] sm:$0xff]
        %v835 = vld [vmem:[#allocation8 + $0x2d8] sm:$0xff]
        %v836 = vld [vmem:[#allocation8 + $0x2e0] sm:$0xff]
        %v837 = vld [vmem:[#allocation8 + $0x2e8] sm:$0xff]
        %v838 = vld [vmem:[#allocation8 + $0x2f0] sm:$0xff]
        %v839 = vld [vmem:[#allocation8 + $0x2f8] sm:$0xff]
        %v840 = vld [vmem:[#allocation8 + $0x300] sm:$0xff]
        %v841 = vld [vmem:[#allocation8 + $0x308] sm:$0xff]
        %v842 = vld [vmem:[#allocation8 + $0x310] sm:$0xff]
        %v843 = vld [vmem:[#allocation8 + $0x318] sm:$0xff]
        %v844 = vld [vmem:[#allocation8 + $0x320] sm:$0xff]
        %v845 = vld [vmem:[#allocation8 + $0x328] sm:$0xff]
        %v846 = vld [vmem:[#allocation8 + $0x330] sm:$0xff]
        %v847 = vld [vmem:[#allocation8 + $0x338] sm:$0xff]
        %v848 = vld [vmem:[#allocation8 + $0x340] sm:$0xff]
        %v849 = vld [vmem:[#allocation8 + $0x348] sm:$0xff]
        %v850 = vld [vmem:[#allocation8 + $0x350] sm:$0xff]
        %v851 = vld [vmem:[#allocation8 + $0x358] sm:$0xff]
        %v852 = vld [vmem:[#allocation8 + $0x360] sm:$0xff]
        %v853 = vld [vmem:[#allocation8 + $0x368] sm:$0xff]
        %v854 = vld [vmem:[#allocation8 + $0x370] sm:$0xff]
        %v855 = vld [vmem:[#allocation8 + $0x378] sm:$0xff]
        %v856 = vld [vmem:[#allocation8 + $0x380] sm:$0xff]
        %v857 = vld [vmem:[#allocation8 + $0x388] sm:$0xff]
        %v858 = vld [vmem:[#allocation8 + $0x390] sm:$0xff]
        %v859 = vld [vmem:[#allocation8 + $0x398] sm:$0xff]
        %v860 = vld [vmem:[#allocation8 + $0x3a0] sm:$0xff]
        %v861 = vld [vmem:[#allocation8 + $0x3a8] sm:$0xff]
        %v862 = vld [vmem:[#allocation8 + $0x3b0] sm:$0xff]
        %v863 = vld [vmem:[#allocation8 + $0x3b8] sm:$0xff]
        %v864 = vld [vmem:[#allocation8 + $0x3c0] sm:$0xff]
        %v865 = vld [vmem:[#allocation8 + $0x3c8] sm:$0xff]
        %v866 = vld [vmem:[#allocation8 + $0x3d0] sm:$0xff]
        %v867 = vld [vmem:[#allocation8 + $0x3d8] sm:$0xff]
        %v868 = vld [vmem:[#allocation8 + $0x3e0] sm:$0xff]
        %v869 = vld [vmem:[#allocation8 + $0x3e8] sm:$0xff]
        %v870 = vld [vmem:[#allocation8 + $0x3f0] sm:$0xff]
        %v871 = vld [vmem:[#allocation8 + $0x3f8] sm:$0xff]
        %v1000 = vunpack.c.l.b16 %v744
        %v1001 = vunpack.c.h.b16 %v744
        %v1002 = vunpack.c.l.b16 %v745
        %v1003 = vunpack.c.h.b16 %v745
        %v1004 = vunpack.c.l.b16 %v746
        %v1005 = vunpack.c.h.b16 %v746
        %v1006 = vunpack.c.l.b16 %v747
        %v1007 = vunpack.c.h.b16 %v747
        %v1008 = vunpack.c.l.b16 %v748
        %v1009 = vunpack.c.h.b16 %v748
        %v1010 = vunpack.c.l.b16 %v749
        %v1011 = vunpack.c.h.b16 %v749
        %v1012 = vunpack.c.l.b16 %v750
        %v1013 = vunpack.c.h.b16 %v750
        %v1014 = vunpack.c.l.b16 %v751
        %v1015 = vunpack.c.h.b16 %v751
        %v1016 = vunpack.c.l.b16 %v752
        %v1017 = vunpack.c.h.b16 %v752
        %v1018 = vunpack.c.l.b16 %v753
        %v1019 = vunpack.c.h.b16 %v753
        %v1020 = vunpack.c.l.b16 %v754
        %v1021 = vunpack.c.h.b16 %v754
        %v1022 = vunpack.c.l.b16 %v755
        %v1023 = vunpack.c.h.b16 %v755
        %v1024 = vunpack.c.l.b16 %v756
        %v1025 = vunpack.c.h.b16 %v756
        %v1026 = vunpack.c.l.b16 %v757
        %v1027 = vunpack.c.h.b16 %v757
        %v1028 = vunpack.c.l.b16 %v758
        %v1029 = vunpack.c.h.b16 %v758
        %v1030 = vunpack.c.l.b16 %v759
        %v1031 = vunpack.c.h.b16 %v759
        %v1032 = vunpack.c.l.b16 %v760
        %v1033 = vunpack.c.h.b16 %v760
        %v1034 = vunpack.c.l.b16 %v761
        %v1035 = vunpack.c.h.b16 %v761
        %v1036 = vunpack.c.l.b16 %v762
        %v1037 = vunpack.c.h.b16 %v762
        %v1038 = vunpack.c.l.b16 %v763
        %v1039 = vunpack.c.h.b16 %v763
        %v1040 = vunpack.c.l.b16 %v764
        %v1041 = vunpack.c.h.b16 %v764
        %v1042 = vunpack.c.l.b16 %v765
        %v1043 = vunpack.c.h.b16 %v765
        %v1044 = vunpack.c.l.b16 %v766
        %v1045 = vunpack.c.h.b16 %v766
        %v1046 = vunpack.c.l.b16 %v767
        %v1047 = vunpack.c.h.b16 %v767
        %v1048 = vunpack.c.l.b16 %v768
        %v1049 = vunpack.c.h.b16 %v768
        %v1050 = vunpack.c.l.b16 %v769
        %v1051 = vunpack.c.h.b16 %v769
        %v1052 = vunpack.c.l.b16 %v770
        %v1053 = vunpack.c.h.b16 %v770
        %v1054 = vunpack.c.l.b16 %v771
        %v1055 = vunpack.c.h.b16 %v771
        %v1056 = vunpack.c.l.b16 %v772
        %v1057 = vunpack.c.h.b16 %v772
        %v1058 = vunpack.c.l.b16 %v773
        %v1059 = vunpack.c.h.b16 %v773
        %v1060 = vunpack.c.l.b16 %v774
        %v1061 = vunpack.c.h.b16 %v774
        %v1062 = vunpack.c.l.b16 %v775
        %v1063 = vunpack.c.h.b16 %v775
        %v1064 = vunpack.c.l.b16 %v776
        %v1065 = vunpack.c.h.b16 %v776
        %v1066 = vunpack.c.l.b16 %v777
        %v1067 = vunpack.c.h.b16 %v777
        %v1068 = vunpack.c.l.b16 %v778
        %v1069 = vunpack.c.h.b16 %v778
        %v1070 = vunpack.c.l.b16 %v779
        %v1071 = vunpack.c.h.b16 %v779
        %v1072 = vunpack.c.l.b16 %v780
        %v1073 = vunpack.c.h.b16 %v780
        %v1074 = vunpack.c.l.b16 %v781
        %v1075 = vunpack.c.h.b16 %v781
        %v1076 = vunpack.c.l.b16 %v782
        %v1077 = vunpack.c.h.b16 %v782
        %v1078 = vunpack.c.l.b16 %v783
        %v1079 = vunpack.c.h.b16 %v783
        %v1080 = vunpack.c.l.b16 %v784
        %v1081 = vunpack.c.h.b16 %v784
        %v1082 = vunpack.c.l.b16 %v785
        %v1083 = vunpack.c.h.b16 %v785
        %v1084 = vunpack.c.l.b16 %v786
        %v1085 = vunpack.c.h.b16 %v786
        %v1086 = vunpack.c.l.b16 %v787
        %v1087 = vunpack.c.h.b16 %v787
        %v1088 = vunpack.c.l.b16 %v788
        %v1089 = vunpack.c.h.b16 %v788
        %v1090 = vunpack.c.l.b16 %v789
        %v1091 = vunpack.c.h.b16 %v789
        %v1092 = vunpack.c.l.b16 %v790
        %v1093 = vunpack.c.h.b16 %v790
        %v1094 = vunpack.c.l.b16 %v791
        %v1095 = vunpack.c.h.b16 %v791
        %v1096 = vunpack.c.l.b16 %v792
        %v1097 = vunpack.c.h.b16 %v792
        %v1098 = vunpack.c.l.b16 %v793
        %v1099 = vunpack.c.h.b16 %v793
        %v1100 = vunpack.c.l.b16 %v794
        %v1101 = vunpack.c.h.b16 %v794
        %v1102 = vunpack.c.l.b16 %v795
        %v1103 = vunpack.c.h.b16 %v795
        %v1104 = vunpack.c.l.b16 %v796
        %v1105 = vunpack.c.h.b16 %v796
        %v1106 = vunpack.c.l.b16 %v797
        %v1107 = vunpack.c.h.b16 %v797
        %v1108 = vunpack.c.l.b16 %v798
        %v1109 = vunpack.c.h.b16 %v798
        %v1110 = vunpack.c.l.b16 %v799
        %v1111 = vunpack.c.h.b16 %v799
        %v1112 = vunpack.c.l.b16 %v800
        %v1113 = vunpack.c.h.b16 %v800
        %v1114 = vunpack.c.l.b16 %v801
        %v1115 = vunpack.c.h.b16 %v801
        %v1116 = vunpack.c.l.b16 %v802
        %v1117 = vunpack.c.h.b16 %v802
        %v1118 = vunpack.c.l.b16 %v803
        %v1119 = vunpack.c.h.b16 %v803
        %v1120 = vunpack.c.l.b16 %v804
        %v1121 = vunpack.c.h.b16 %v804
        %v1122 = vunpack.c.l.b16 %v805
        %v1123 = vunpack.c.h.b16 %v805
        %v1124 = vunpack.c.l.b16 %v806
        %v1125 = vunpack.c.h.b16 %v806
        %v1126 = vunpack.c.l.b16 %v807
        %v1127 = vunpack.c.h.b16 %v807
        %v1128 = vunpack.c.l.b16 %v808
        %v1129 = vunpack.c.h.b16 %v808
        %v1130 = vunpack.c.l.b16 %v809
        %v1131 = vunpack.c.h.b16 %v809
        %v1132 = vunpack.c.l.b16 %v810
        %v1133 = vunpack.c.h.b16 %v810
        %v1134 = vunpack.c.l.b16 %v811
        %v1135 = vunpack.c.h.b16 %v811
        %v1136 = vunpack.c.l.b16 %v812
        %v1137 = vunpack.c.h.b16 %v812
        %v1138 = vunpack.c.l.b16 %v813
        %v1139 = vunpack.c.h.b16 %v813
        %v1140 = vunpack.c.l.b16 %v814
        %v1141 = vunpack.c.h.b16 %v814
        %v1142 = vunpack.c.l.b16 %v815
        %v1143 = vunpack.c.h.b16 %v815
        %v1144 = vunpack.c.l.b16 %v816
        %v1145 = vunpack.c.h.b16 %v816
        %v1146 = vunpack.c.l.b16 %v817
        %v1147 = vunpack.c.h.b16 %v817
        %v1148 = vunpack.c.l.b16 %v818
        %v1149 = vunpack.c.h.b16 %v818
        %v1150 = vunpack.c.l.b16 %v819
        %v1151 = vunpack.c.h.b16 %v819
        %v1152 = vunpack.c.l.b16 %v820
        %v1153 = vunpack.c.h.b16 %v820
        %v1154 = vunpack.c.l.b16 %v821
        %v1155 = vunpack.c.h.b16 %v821
        %v1156 = vunpack.c.l.b16 %v822
        %v1157 = vunpack.c.h.b16 %v822
        %v1158 = vunpack.c.l.b16 %v823
        %v1159 = vunpack.c.h.b16 %v823
        %v1160 = vunpack.c.l.b16 %v824
        %v1161 = vunpack.c.h.b16 %v824
        %v1162 = vunpack.c.l.b16 %v825
        %v1163 = vunpack.c.h.b16 %v825
        %v1164 = vunpack.c.l.b16 %v826
        %v1165 = vunpack.c.h.b16 %v826
        %v1166 = vunpack.c.l.b16 %v827
        %v1167 = vunpack.c.h.b16 %v827
        %v1168 = vunpack.c.l.b16 %v828
        %v1169 = vunpack.c.h.b16 %v828
        %v1170 = vunpack.c.l.b16 %v829
        %v1171 = vunpack.c.h.b16 %v829
        %v1172 = vunpack.c.l.b16 %v830
        %v1173 = vunpack.c.h.b16 %v830
        %v1174 = vunpack.c.l.b16 %v831
        %v1175 = vunpack.c.h.b16 %v831
        %v1176 = vunpack.c.l.b16 %v832
        %v1177 = vunpack.c.h.b16 %v832
        %v1178 = vunpack.c.l.b16 %v833
        %v1179 = vunpack.c.h.b16 %v833
        %v1180 = vunpack.c.l.b16 %v834
        %v1181 = vunpack.c.h.b16 %v834
        %v1182 = vunpack.c.l.b16 %v835
        %v1183 = vunpack.c.h.b16 %v835
        %v1184 = vunpack.c.l.b16 %v836
        %v1185 = vunpack.c.h.b16 %v836
        %v1186 = vunpack.c.l.b16 %v837
        %v1187 = vunpack.c.h.b16 %v837
        %v1188 = vunpack.c.l.b16 %v838
        %v1189 = vunpack.c.h.b16 %v838
        %v1190 = vunpack.c.l.b16 %v839
        %v1191 = vunpack.c.h.b16 %v839
        %v1192 = vunpack.c.l.b16 %v840
        %v1193 = vunpack.c.h.b16 %v840
        %v1194 = vunpack.c.l.b16 %v841
        %v1195 = vunpack.c.h.b16 %v841
        %v1196 = vunpack.c.l.b16 %v842
        %v1197 = vunpack.c.h.b16 %v842
        %v1198 = vunpack.c.l.b16 %v843
        %v1199 = vunpack.c.h.b16 %v843
        %v1200 = vunpack.c.l.b16 %v844
        %v1201 = vunpack.c.h.b16 %v844
        %v1202 = vunpack.c.l.b16 %v845
        %v1203 = vunpack.c.h.b16 %v845
        %v1204 = vunpack.c.l.b16 %v846
        %v1205 = vunpack.c.h.b16 %v846
        %v1206 = vunpack.c.l.b16 %v847
        %v1207 = vunpack.c.h.b16 %v847
        %v1208 = vunpack.c.l.b16 %v848
        %v1209 = vunpack.c.h.b16 %v848
        %v1210 = vunpack.c.l.b16 %v849
        %v1211 = vunpack.c.h.b16 %v849
        %v1212 = vunpack.c.l.b16 %v850
        %v1213 = vunpack.c.h.b16 %v850
        %v1214 = vunpack.c.l.b16 %v851
        %v1215 = vunpack.c.h.b16 %v851
        %v1216 = vunpack.c.l.b16 %v852
        %v1217 = vunpack.c.h.b16 %v852
        %v1218 = vunpack.c.l.b16 %v853
        %v1219 = vunpack.c.h.b16 %v853
        %v1220 = vunpack.c.l.b16 %v854
        %v1221 = vunpack.c.h.b16 %v854
        %v1222 = vunpack.c.l.b16 %v855
        %v1223 = vunpack.c.h.b16 %v855
        %v1224 = vunpack.c.l.b16 %v856
        %v1225 = vunpack.c.h.b16 %v856
        %v1226 = vunpack.c.l.b16 %v857
        %v1227 = vunpack.c.h.b16 %v857
        %v1228 = vunpack.c.l.b16 %v858
        %v1229 = vunpack.c.h.b16 %v858
        %v1230 = vunpack.c.l.b16 %v859
        %v1231 = vunpack.c.h.b16 %v859
        %v1232 = vunpack.c.l.b16 %v860
        %v1233 = vunpack.c.h.b16 %v860
        %v1234 = vunpack.c.l.b16 %v861
        %v1235 = vunpack.c.h.b16 %v861
        %v1236 = vunpack.c.l.b16 %v862
        %v1237 = vunpack.c.h.b16 %v862
        %v1238 = vunpack.c.l.b16 %v863
        %v1239 = vunpack.c.h.b16 %v863
        %v1240 = vunpack.c.l.b16 %v864
        %v1241 = vunpack.c.h.b16 %v864
        %v1242 = vunpack.c.l.b16 %v865
        %v1243 = vunpack.c.h.b16 %v865
        %v1244 = vunpack.c.l.b16 %v866
        %v1245 = vunpack.c.h.b16 %v866
        %v1246 = vunpack.c.l.b16 %v867
        %v1247 = vunpack.c.h.b16 %v867
        %v1248 = vunpack.c.l.b16 %v868
        %v1249 = vunpack.c.h.b16 %v868
        %v1250 = vunpack.c.l.b16 %v869
        %v1251 = vunpack.c.h.b16 %v869
        %v1252 = vunpack.c.l.b16 %v870
        %v1253 = vunpack.c.h.b16 %v870
        %v1254 = vunpack.c.l.b16 %v871
        %v1255 = vunpack.c.h.b16 %v871
        %v1256 = vpack.c.b16 %v1008, %v1000
        %v1257 = vpack.c.b16 %v1009, %v1001
        %v1258 = vpack.c.b16 %v1010, %v1002
        %v1259 = vpack.c.b16 %v1011, %v1003
        %v1260 = vpack.c.b16 %v1012, %v1004
        %v1261 = vpack.c.b16 %v1013, %v1005
        %v1262 = vpack.c.b16 %v1014, %v1006
        %v1263 = vpack.c.b16 %v1015, %v1007
        %v1264 = vpack.c.b16 %v1024, %v1016
        %v1265 = vpack.c.b16 %v1025, %v1017
        %v1266 = vpack.c.b16 %v1026, %v1018
        %v1267 = vpack.c.b16 %v1027, %v1019
        %v1268 = vpack.c.b16 %v1028, %v1020
        %v1269 = vpack.c.b16 %v1029, %v1021
        %v1270 = vpack.c.b16 %v1030, %v1022
        %v1271 = vpack.c.b16 %v1031, %v1023
        %v1272 = vpack.c.b16 %v1040, %v1032
        %v1273 = vpack.c.b16 %v1041, %v1033
        %v1274 = vpack.c.b16 %v1042, %v1034
        %v1275 = vpack.c.b16 %v1043, %v1035
        %v1276 = vpack.c.b16 %v1044, %v1036
        %v1277 = vpack.c.b16 %v1045, %v1037
        %v1278 = vpack.c.b16 %v1046, %v1038
        %v1279 = vpack.c.b16 %v1047, %v1039
        %v1280 = vpack.c.b16 %v1056, %v1048
        %v1281 = vpack.c.b16 %v1057, %v1049
        %v1282 = vpack.c.b16 %v1058, %v1050
        %v1283 = vpack.c.b16 %v1059, %v1051
        %v1284 = vpack.c.b16 %v1060, %v1052
        %v1285 = vpack.c.b16 %v1061, %v1053
        %v1286 = vpack.c.b16 %v1062, %v1054
        %v1287 = vpack.c.b16 %v1063, %v1055
        %v1288 = vpack.c.b16 %v1072, %v1064
        %v1289 = vpack.c.b16 %v1073, %v1065
        %v1290 = vpack.c.b16 %v1074, %v1066
        %v1291 = vpack.c.b16 %v1075, %v1067
        %v1292 = vpack.c.b16 %v1076, %v1068
        %v1293 = vpack.c.b16 %v1077, %v1069
        %v1294 = vpack.c.b16 %v1078, %v1070
        %v1295 = vpack.c.b16 %v1079, %v1071
        %v1296 = vpack.c.b16 %v1088, %v1080
        %v1297 = vpack.c.b16 %v1089, %v1081
        %v1298 = vpack.c.b16 %v1090, %v1082
        %v1299 = vpack.c.b16 %v1091, %v1083
        %v1300 = vpack.c.b16 %v1092, %v1084
        %v1301 = vpack.c.b16 %v1093, %v1085
        %v1302 = vpack.c.b16 %v1094, %v1086
        %v1303 = vpack.c.b16 %v1095, %v1087
        %v1304 = vpack.c.b16 %v1104, %v1096
        %v1305 = vpack.c.b16 %v1105, %v1097
        %v1306 = vpack.c.b16 %v1106, %v1098
        %v1307 = vpack.c.b16 %v1107, %v1099
        %v1308 = vpack.c.b16 %v1108, %v1100
        %v1309 = vpack.c.b16 %v1109, %v1101
        %v1310 = vpack.c.b16 %v1110, %v1102
        %v1311 = vpack.c.b16 %v1111, %v1103
        %v1312 = vpack.c.b16 %v1120, %v1112
        %v1313 = vpack.c.b16 %v1121, %v1113
        %v1314 = vpack.c.b16 %v1122, %v1114
        %v1315 = vpack.c.b16 %v1123, %v1115
        %v1316 = vpack.c.b16 %v1124, %v1116
        %v1317 = vpack.c.b16 %v1125, %v1117
        %v1318 = vpack.c.b16 %v1126, %v1118
        %v1319 = vpack.c.b16 %v1127, %v1119
        %v1320 = vpack.c.b16 %v1136, %v1128
        %v1321 = vpack.c.b16 %v1137, %v1129
        %v1322 = vpack.c.b16 %v1138, %v1130
        %v1323 = vpack.c.b16 %v1139, %v1131
        %v1324 = vpack.c.b16 %v1140, %v1132
        %v1325 = vpack.c.b16 %v1141, %v1133
        %v1326 = vpack.c.b16 %v1142, %v1134
        %v1327 = vpack.c.b16 %v1143, %v1135
        %v1328 = vpack.c.b16 %v1152, %v1144
        %v1329 = vpack.c.b16 %v1153, %v1145
        %v1330 = vpack.c.b16 %v1154, %v1146
        %v1331 = vpack.c.b16 %v1155, %v1147
        %v1332 = vpack.c.b16 %v1156, %v1148
        %v1333 = vpack.c.b16 %v1157, %v1149
        %v1334 = vpack.c.b16 %v1158, %v1150
        %v1335 = vpack.c.b16 %v1159, %v1151
        %v1336 = vpack.c.b16 %v1168, %v1160
        %v1337 = vpack.c.b16 %v1169, %v1161
        %v1338 = vpack.c.b16 %v1170, %v1162
        %v1339 = vpack.c.b16 %v1171, %v1163
        %v1340 = vpack.c.b16 %v1172, %v1164
        %v1341 = vpack.c.b16 %v1173, %v1165
        %v1342 = vpack.c.b16 %v1174, %v1166
        %v1343 = vpack.c.b16 %v1175, %v1167
        %v1344 = vpack.c.b16 %v1184, %v1176
        %v1345 = vpack.c.b16 %v1185, %v1177
        %v1346 = vpack.c.b16 %v1186, %v1178
        %v1347 = vpack.c.b16 %v1187, %v1179
        %v1348 = vpack.c.b16 %v1188, %v1180
        %v1349 = vpack.c.b16 %v1189, %v1181
        %v1350 = vpack.c.b16 %v1190, %v1182
        %v1351 = vpack.c.b16 %v1191, %v1183
        %v1352 = vpack.c.b16 %v1200, %v1192
        %v1353 = vpack.c.b16 %v1201, %v1193
        %v1354 = vpack.c.b16 %v1202, %v1194
        %v1355 = vpack.c.b16 %v1203, %v1195
        %v1356 = vpack.c.b16 %v1204, %v1196
        %v1357 = vpack.c.b16 %v1205, %v1197
        %v1358 = vpack.c.b16 %v1206, %v1198
        %v1359 = vpack.c.b16 %v1207, %v1199
        %v1360 = vpack.c.b16 %v1216, %v1208
        %v1361 = vpack.c.b16 %v1217, %v1209
        %v1362 = vpack.c.b16 %v1218, %v1210
        %v1363 = vpack.c.b16 %v1219, %v1211
        %v1364 = vpack.c.b16 %v1220, %v1212
        %v1365 = vpack.c.b16 %v1221, %v1213
        %v1366 = vpack.c.b16 %v1222, %v1214
        %v1367 = vpack.c.b16 %v1223, %v1215
        %v1368 = vpack.c.b16 %v1232, %v1224
        %v1369 = vpack.c.b16 %v1233, %v1225
        %v1370 = vpack.c.b16 %v1234, %v1226
        %v1371 = vpack.c.b16 %v1235, %v1227
        %v1372 = vpack.c.b16 %v1236, %v1228
        %v1373 = vpack.c.b16 %v1237, %v1229
        %v1374 = vpack.c.b16 %v1238, %v1230
        %v1375 = vpack.c.b16 %v1239, %v1231
        %v1376 = vpack.c.b16 %v1248, %v1240
        %v1377 = vpack.c.b16 %v1249, %v1241
        %v1378 = vpack.c.b16 %v1250, %v1242
        %v1379 = vpack.c.b16 %v1251, %v1243
        %v1380 = vpack.c.b16 %v1252, %v1244
        %v1381 = vpack.c.b16 %v1253, %v1245
        %v1382 = vpack.c.b16 %v1254, %v1246
        %v1383 = vpack.c.b16 %v1255, %v1247
        %1512 = vmatprep.subr.bf16.mxu0 %v1257
        %1513 = vmatpush1.bf16.msra.mxu0 %v1256
        %1514 = vmatprep.subr.bf16.mxu0 %v1265
        %1515 = vmatpush1.bf16.msra.mxu0 %v1264
        %1516 = vmatprep.subr.bf16.mxu0 %v1273
        %1517 = vmatpush1.bf16.msra.mxu0 %v1272
        %1518 = vmatprep.subr.bf16.mxu0 %v1281
        %1519 = vmatpush1.bf16.msra.mxu0 %v1280
        %1520 = vmatprep.subr.bf16.mxu0 %v1289
        %1521 = vmatpush1.bf16.msra.mxu0 %v1288
        %1522 = vmatprep.subr.bf16.mxu0 %v1297
        %1523 = vmatpush1.bf16.msra.mxu0 %v1296
        %1524 = vmatprep.subr.bf16.mxu0 %v1305
        %1525 = vmatpush1.bf16.msra.mxu0 %v1304
        %1526 = vmatprep.subr.bf16.mxu0 %v1313
        %1527 = vmatpush1.bf16.msra.mxu0 %v1312
        %1528 = vmatprep.subr.bf16.mxu0 %v1321
        %1529 = vmatpush1.bf16.msra.mxu0 %v1320
        %1530 = vmatprep.subr.bf16.mxu0 %v1329
        %1531 = vmatpush1.bf16.msra.mxu0 %v1328
        %1532 = vmatprep.subr.bf16.mxu0 %v1337
        %1533 = vmatpush1.bf16.msra.mxu0 %v1336
        %1534 = vmatprep.subr.bf16.mxu0 %v1345
        %1535 = vmatpush1.bf16.msra.mxu0 %v1344
        %1536 = vmatprep.subr.bf16.mxu0 %v1353
        %1537 = vmatpush1.bf16.msra.mxu0 %v1352
        %1538 = vmatprep.subr.bf16.mxu0 %v1361
        %1539 = vmatpush1.bf16.msra.mxu0 %v1360
        %1540 = vmatprep.subr.bf16.mxu0 %v1369
        %1541 = vmatpush1.bf16.msra.mxu0 %v1368
        %1542 = vmatprep.subr.bf16.mxu0 %v1377
        %1543 = vmatpush1.bf16.msra.mxu0 %v1376
        %1544 = vmatprep.mubr.bf16.mxu0 %v743
        %1545 = vmatmul.mubr.bf16.gmra.mrb[0].mxu0 %v742
        %v1546 = vpop.f32.mrb[0].mxu0
        %v1547 = vadd.f32 0.0, %v1546
        %v1548 = vpop.f32.mrb[0].mxu0
        %v1549 = vadd.f32 0.0, %v1548
        %v1550 = vpop.f32.mrb[0].mxu0
        %v1551 = vpop.f32.mrb[0].mxu0
        %1552 = vdwg.mxu0
        %1553 = vmatprep.subr.bf16.mxu0 %v1259
        %1554 = vmatpush1.bf16.msra.mxu0 %v1258
        %1555 = vmatprep.subr.bf16.mxu0 %v1267
        %1556 = vmatpush1.bf16.msra.mxu0 %v1266
        %1557 = vmatprep.subr.bf16.mxu0 %v1275
        %1558 = vmatpush1.bf16.msra.mxu0 %v1274
        %1559 = vmatprep.subr.bf16.mxu0 %v1283
        %1560 = vmatpush1.bf16.msra.mxu0 %v1282
        %1561 = vmatprep.subr.bf16.mxu0 %v1291
        %1562 = vmatpush1.bf16.msra.mxu0 %v1290
        %1563 = vmatprep.subr.bf16.mxu0 %v1299
        %1564 = vmatpush1.bf16.msra.mxu0 %v1298
        %1565 = vmatprep.subr.bf16.mxu0 %v1307
        %1566 = vmatpush1.bf16.msra.mxu0 %v1306
        %1567 = vmatprep.subr.bf16.mxu0 %v1315
        %1568 = vmatpush1.bf16.msra.mxu0 %v1314
        %1569 = vmatprep.subr.bf16.mxu0 %v1323
        %1570 = vmatpush1.bf16.msra.mxu0 %v1322
        %1571 = vmatprep.subr.bf16.mxu0 %v1331
        %1572 = vmatpush1.bf16.msra.mxu0 %v1330
        %1573 = vmatprep.subr.bf16.mxu0 %v1339
        %1574 = vmatpush1.bf16.msra.mxu0 %v1338
        %1575 = vmatprep.subr.bf16.mxu0 %v1347
        %1576 = vmatpush1.bf16.msra.mxu0 %v1346
        %1577 = vmatprep.subr.bf16.mxu0 %v1355
        %1578 = vmatpush1.bf16.msra.mxu0 %v1354
        %1579 = vmatprep.subr.bf16.mxu0 %v1363
        %1580 = vmatpush1.bf16.msra.mxu0 %v1362
        %1581 = vmatprep.subr.bf16.mxu0 %v1371
        %1582 = vmatpush1.bf16.msra.mxu0 %v1370
        %1583 = vmatprep.subr.bf16.mxu0 %v1379
        %1584 = vmatpush1.bf16.msra.mxu0 %v1378
        %1585 = vmatprep.mubr.bf16.mxu0 %v743
        %1586 = vmatmul.mubr.bf16.gmra.mrb[0].mxu0 %v742
        %v1587 = vpop.f32.mrb[0].mxu0
        %v1588 = vadd.f32 0.0, %v1587
        %v1589 = vpop.f32.mrb[0].mxu0
        %v1590 = vadd.f32 0.0, %v1589
        %v1591 = vpop.f32.mrb[0].mxu0
        %v1592 = vpop.f32.mrb[0].mxu0
        %1593 = vdwg.mxu0
        %1594 = vmatprep.subr.bf16.mxu0 %v1261
        %1595 = vmatpush1.bf16.msra.mxu0 %v1260
        %1596 = vmatprep.subr.bf16.mxu0 %v1269
        %1597 = vmatpush1.bf16.msra.mxu0 %v1268
        %1598 = vmatprep.subr.bf16.mxu0 %v1277
        %1599 = vmatpush1.bf16.msra.mxu0 %v1276
        %1600 = vmatprep.subr.bf16.mxu0 %v1285
        %1601 = vmatpush1.bf16.msra.mxu0 %v1284
        %1602 = vmatprep.subr.bf16.mxu0 %v1293
        %1603 = vmatpush1.bf16.msra.mxu0 %v1292
        %1604 = vmatprep.subr.bf16.mxu0 %v1301
        %1605 = vmatpush1.bf16.msra.mxu0 %v1300
        %1606 = vmatprep.subr.bf16.mxu0 %v1309
        %1607 = vmatpush1.bf16.msra.mxu0 %v1308
        %1608 = vmatprep.subr.bf16.mxu0 %v1317
        %1609 = vmatpush1.bf16.msra.mxu0 %v1316
        %1610 = vmatprep.subr.bf16.mxu0 %v1325
        %1611 = vmatpush1.bf16.msra.mxu0 %v1324
        %1612 = vmatprep.subr.bf16.mxu0 %v1333
        %1613 = vmatpush1.bf16.msra.mxu0 %v1332
        %1614 = vmatprep.subr.bf16.mxu0 %v1341
        %1615 = vmatpush1.bf16.msra.mxu0 %v1340
        %1616 = vmatprep.subr.bf16.mxu0 %v1349
        %1617 = vmatpush1.bf16.msra.mxu0 %v1348
        %1618 = vmatprep.subr.bf16.mxu0 %v1357
        %1619 = vmatpush1.bf16.msra.mxu0 %v1356
        %1620 = vmatprep.subr.bf16.mxu0 %v1365
        %1621 = vmatpush1.bf16.msra.mxu0 %v1364
        %1622 = vmatprep.subr.bf16.mxu0 %v1373
        %1623 = vmatpush1.bf16.msra.mxu0 %v1372
        %1624 = vmatprep.subr.bf16.mxu0 %v1381
        %1625 = vmatpush1.bf16.msra.mxu0 %v1380
        %1626 = vmatprep.mubr.bf16.mxu0 %v743
        %1627 = vmatmul.mubr.bf16.gmra.mrb[0].mxu0 %v742
        %v1628 = vpop.f32.mrb[0].mxu0
        %v1629 = vadd.f32 0.0, %v1628
        %v1630 = vpop.f32.mrb[0].mxu0
        %v1631 = vadd.f32 0.0, %v1630
        %v1632 = vpop.f32.mrb[0].mxu0
        %v1633 = vpop.f32.mrb[0].mxu0
        %1634 = vdwg.mxu0
        %1635 = vmatprep.subr.bf16.mxu0 %v1263
        %1636 = vmatpush1.bf16.msra.mxu0 %v1262
        %1637 = vmatprep.subr.bf16.mxu0 %v1271
        %1638 = vmatpush1.bf16.msra.mxu0 %v1270
        %1639 = vmatprep.subr.bf16.mxu0 %v1279
        %1640 = vmatpush1.bf16.msra.mxu0 %v1278
        %1641 = vmatprep.subr.bf16.mxu0 %v1287
        %1642 = vmatpush1.bf16.msra.mxu0 %v1286
        %1643 = vmatprep.subr.bf16.mxu0 %v1295
        %1644 = vmatpush1.bf16.msra.mxu0 %v1294
        %1645 = vmatprep.subr.bf16.mxu0 %v1303
        %1646 = vmatpush1.bf16.msra.mxu0 %v1302
        %1647 = vmatprep.subr.bf16.mxu0 %v1311
        %1648 = vmatpush1.bf16.msra.mxu0 %v1310
        %1649 = vmatprep.subr.bf16.mxu0 %v1319
        %1650 = vmatpush1.bf16.msra.mxu0 %v1318
        %1651 = vmatprep.subr.bf16.mxu0 %v1327
        %1652 = vmatpush1.bf16.msra.mxu0 %v1326
        %1653 = vmatprep.subr.bf16.mxu0 %v1335
        %1654 = vmatpush1.bf16.msra.mxu0 %v1334
        %1655 = vmatprep.subr.bf16.mxu0 %v1343
        %1656 = vmatpush1.bf16.msra.mxu0 %v1342
        %1657 = vmatprep.subr.bf16.mxu0 %v1351
        %1658 = vmatpush1.bf16.msra.mxu0 %v1350
        %1659 = vmatprep.subr.bf16.mxu0 %v1359
        %1660 = vmatpush1.bf16.msra.mxu0 %v1358
        %1661 = vmatprep.subr.bf16.mxu0 %v1367
        %1662 = vmatpush1.bf16.msra.mxu0 %v1366
        %1663 = vmatprep.subr.bf16.mxu0 %v1375
        %1664 = vmatpush1.bf16.msra.mxu0 %v1374
        %1665 = vmatprep.subr.bf16.mxu0 %v1383
        %1666 = vmatpush1.bf16.msra.mxu0 %v1382
        %1667 = vmatprep.mubr.bf16.mxu0 %v743
        %1668 = vmatmul.mubr.bf16.gmra.mrb[0].mxu0 %v742
        %v1669 = vpop.f32.mrb[0].mxu0
        %v1670 = vadd.f32 0.0, %v1669
        %v1671 = vpop.f32.mrb[0].mxu0
        %v1672 = vadd.f32 0.0, %v1671
        %v1673 = vpop.f32.mrb[0].mxu0
        %v1674 = vpop.f32.mrb[0].mxu0
        %1675 = vdwg.mxu0
        %v1676 = vadd.f32 %v734, %v1547
        %v1677 = vadd.f32 %v735, %v1549
        %v1678 = vadd.f32 %v736, %v1588
        %v1679 = vadd.f32 %v737, %v1590
        %v1680 = vadd.f32 %v738, %v1629
        %v1681 = vadd.f32 %v739, %v1631
        %v1682 = vadd.f32 %v740, %v1670
        %v1683 = vadd.f32 %v741, %v1672
        %v1684 = vxor.u32 %v1676, 2147483648
        %v1685 = vxor.u32 %v1677, 2147483648
        %v1686 = vxor.u32 %v1678, 2147483648
        %v1687 = vxor.u32 %v1679, 2147483648
        %v1688 = vxor.u32 %v1680, 2147483648
        %v1689 = vxor.u32 %v1681, 2147483648
        %v1690 = vmul.f32 %v1684, 1.442695
        %v1691 = vpow.pop %v1690
        %v1692 = vmul.f32 %v1685, 1.442695
        %v1693 = vpow.pop %v1692
        %v1694 = vmul.f32 %v1686, 1.442695
        %v1695 = vpow.pop %v1694
        %v1696 = vmul.f32 %v1687, 1.442695
        %v1697 = vpow.pop %v1696
        %v1698 = vmul.f32 %v1688, 1.442695
        %v1699 = vpow.pop %v1698
        %v1700 = vmul.f32 %v1689, 1.442695
        %v1701 = vpow.pop %v1700
        %v1702 = vadd.f32 %v1691, 1.0
        %v1703 = vadd.f32 %v1693, 1.0
        %v1704 = vadd.f32 %v1695, 1.0
        %v1705 = vadd.f32 %v1697, 1.0
        %v1706 = vadd.f32 %v1699, 1.0
        %v1707 = vadd.f32 %v1701, 1.0
        %v1708 = vrcp.pop %v1702
        %v1709 = vmul.f32 1.0, %v1708
        %v1710 = vrcp.pop %v1703
        %v1711 = vmul.f32 1.0, %v1710
        %v1712 = vrcp.pop %v1704
        %v1713 = vmul.f32 1.0, %v1712
        %v1714 = vrcp.pop %v1705
        %v1715 = vmul.f32 1.0, %v1714
        %v1716 = vrcp.pop %v1706
        %v1717 = vmul.f32 1.0, %v1716
        %v1718 = vrcp.pop %v1707
        %v1719 = vmul.f32 1.0, %v1718
        %v1720 = vtanh.pop %v1682
        %v1721 = vtanh.pop %v1683
        %v1722 = vmul.f32 %v1713, %v729
        %v1723 = vmul.f32 %v1715, %v730
        %v1724 = vmul.f32 %v1709, %v1720
        %v1725 = vmul.f32 %v1711, %v1721
        %v1726 = vadd.f32 %v1722, %v1724
        %v1727 = vadd.f32 %v1723, %v1725
        %v1728 = vtanh.pop %v1726
        %v1729 = vtanh.pop %v1727
        %v1730 = vmul.f32 %v1717, %v1728
        %v1731 = vmul.f32 %v1719, %v1729
        %s1732 = smul.u32 1, 8
        %s1733 = smul.addr %s1732, 8
        %s1734 = scalar_lea.vmem [#allocation2], %s1733
        %v1735 = vld [vmem:[%s1734] sm:$0xff]
        %v1736 = vld [vmem:[%s1734 + $0x8] sm:$0xff]
        %v1737 = vld [vmem:[%s1734 + $0x10] sm:$0xff]
        %v1738 = vld [vmem:[%s1734 + $0x18] sm:$0xff]
        %v1739 = vld [vmem:[%s1734 + $0x20] sm:$0xff]
        %v1740 = vld [vmem:[%s1734 + $0x28] sm:$0xff]
        %v1741 = vld [vmem:[%s1734 + $0x30] sm:$0xff]
        %v1742 = vld [vmem:[%s1734 + $0x38] sm:$0xff]
        %v1743 = vpack.c.bf16 %v1730, %v1730
        %v1744 = vpack.c.bf16 %v1731, %v1731
        %1745 = vmatprep.subr.bf16.mxu0 %v1257
        %1746 = vmatpush1.bf16.msra.mxu0 %v1256
        %1747 = vmatprep.subr.bf16.mxu0 %v1265
        %1748 = vmatpush1.bf16.msra.mxu0 %v1264
        %1749 = vmatprep.subr.bf16.mxu0 %v1273
        %1750 = vmatpush1.bf16.msra.mxu0 %v1272
        %1751 = vmatprep.subr.bf16.mxu0 %v1281
        %1752 = vmatpush1.bf16.msra.mxu0 %v1280
        %1753 = vmatprep.subr.bf16.mxu0 %v1289
        %1754 = vmatpush1.bf16.msra.mxu0 %v1288
        %1755 = vmatprep.subr.bf16.mxu0 %v1297
        %1756 = vmatpush1.bf16.msra.mxu0 %v1296
        %1757 = vmatprep.subr.bf16.mxu0 %v1305
        %1758 = vmatpush1.bf16.msra.mxu0 %v1304
        %1759 = vmatprep.subr.bf16.mxu0 %v1313
        %1760 = vmatpush1.bf16.msra.mxu0 %v1312
        %1761 = vmatprep.subr.bf16.mxu0 %v1321
        %1762 = vmatpush1.bf16.msra.mxu0 %v1320
        %1763 = vmatprep.subr.bf16.mxu0 %v1329
        %1764 = vmatpush1.bf16.msra.mxu0 %v1328
        %1765 = vmatprep.subr.bf16.mxu0 %v1337
        %1766 = vmatpush1.bf16.msra.mxu0 %v1336
        %1767 = vmatprep.subr.bf16.mxu0 %v1345
        %1768 = vmatpush1.bf16.msra.mxu0 %v1344
        %1769 = vmatprep.subr.bf16.mxu0 %v1353
        %1770 = vmatpush1.bf16.msra.mxu0 %v1352
        %1771 = vmatprep.subr.bf16.mxu0 %v1361
        %1772 = vmatpush1.bf16.msra.mxu0 %v1360
        %1773 = vmatprep.subr.bf16.mxu0 %v1369
        %1774 = vmatpush1.bf16.msra.mxu0 %v1368
        %1775 = vmatprep.subr.bf16.mxu0 %v1377
        %1776 = vmatpush1.bf16.msra.mxu0 %v1376
        %1777 = vmatprep.mubr.bf16.mxu0 %v1744
        %1778 = vmatmul.mubr.bf16.gmra.mrb[0].mxu0 %v1743
        %v1779 = vpop.f32.mrb[0].mxu0
        %v1780 = vadd.f32 0.0, %v1779
        %v1781 = vpop.f32.mrb[0].mxu0
        %v1782 = vadd.f32 0.0, %v1781
        %v1783 = vpop.f32.mrb[0].mxu0
        %v1784 = vpop.f32.mrb[0].mxu0
        %1785 = vdwg.mxu0
        %1786 = vmatprep.subr.bf16.mxu0 %v1259
        %1787 = vmatpush1.bf16.msra.mxu0 %v1258
        %1788 = vmatprep.subr.bf16.mxu0 %v1267
        %1789 = vmatpush1.bf16.msra.mxu0 %v1266
        %1790 = vmatprep.subr.bf16.mxu0 %v1275
        %1791 = vmatpush1.bf16.msra.mxu0 %v1274
        %1792 = vmatprep.subr.bf16.mxu0 %v1283
        %1793 = vmatpush1.bf16.msra.mxu0 %v1282
        %1794 = vmatprep.subr.bf16.mxu0 %v1291
        %1795 = vmatpush1.bf16.msra.mxu0 %v1290
        %1796 = vmatprep.subr.bf16.mxu0 %v1299
        %1797 = vmatpush1.bf16.msra.mxu0 %v1298
        %1798 = vmatprep.subr.bf16.mxu0 %v1307
        %1799 = vmatpush1.bf16.msra.mxu0 %v1306
        %1800 = vmatprep.subr.bf16.mxu0 %v1315
        %1801 = vmatpush1.bf16.msra.mxu0 %v1314
        %1802 = vmatprep.subr.bf16.mxu0 %v1323
        %1803 = vmatpush1.bf16.msra.mxu0 %v1322
        %1804 = vmatprep.subr.bf16.mxu0 %v1331
        %1805 = vmatpush1.bf16.msra.mxu0 %v1330
        %1806 = vmatprep.subr.bf16.mxu0 %v1339
        %1807 = vmatpush1.bf16.msra.mxu0 %v1338
        %1808 = vmatprep.subr.bf16.mxu0 %v1347
        %1809 = vmatpush1.bf16.msra.mxu0 %v1346
        %1810 = vmatprep.subr.bf16.mxu0 %v1355
        %1811 = vmatpush1.bf16.msra.mxu0 %v1354
        %1812 = vmatprep.subr.bf16.mxu0 %v1363
        %1813 = vmatpush1.bf16.msra.mxu0 %v1362
        %1814 = vmatprep.subr.bf16.mxu0 %v1371
        %1815 = vmatpush1.bf16.msra.mxu0 %v1370
        %1816 = vmatprep.subr.bf16.mxu0 %v1379
        %1817 = vmatpush1.bf16.msra.mxu0 %v1378
        %1818 = vmatprep.mubr.bf16.mxu0 %v1744
        %1819 = vmatmul.mubr.bf16.gmra.mrb[0].mxu0 %v1743
        %v1820 = vpop.f32.mrb[0].mxu0
        %v1821 = vadd.f32 0.0, %v1820
        %v1822 = vpop.f32.mrb[0].mxu0
        %v1823 = vadd.f32 0.0, %v1822
        %v1824 = vpop.f32.mrb[0].mxu0
        %v1825 = vpop.f32.mrb[0].mxu0
        %1826 = vdwg.mxu0
        %1827 = vmatprep.subr.bf16.mxu0 %v1261
        %1828 = vmatpush1.bf16.msra.mxu0 %v1260
        %1829 = vmatprep.subr.bf16.mxu0 %v1269
        %1830 = vmatpush1.bf16.msra.mxu0 %v1268
        %1831 = vmatprep.subr.bf16.mxu0 %v1277
        %1832 = vmatpush1.bf16.msra.mxu0 %v1276
        %1833 = vmatprep.subr.bf16.mxu0 %v1285
        %1834 = vmatpush1.bf16.msra.mxu0 %v1284
        %1835 = vmatprep.subr.bf16.mxu0 %v1293
        %1836 = vmatpush1.bf16.msra.mxu0 %v1292
        %1837 = vmatprep.subr.bf16.mxu0 %v1301
        %1838 = vmatpush1.bf16.msra.mxu0 %v1300
        %1839 = vmatprep.subr.bf16.mxu0 %v1309
        %1840 = vmatpush1.bf16.msra.mxu0 %v1308
        %1841 = vmatprep.subr.bf16.mxu0 %v1317
        %1842 = vmatpush1.bf16.msra.mxu0 %v1316
        %1843 = vmatprep.subr.bf16.mxu0 %v1325
        %1844 = vmatpush1.bf16.msra.mxu0 %v1324
        %1845 = vmatprep.subr.bf16.mxu0 %v1333
        %1846 = vmatpush1.bf16.msra.mxu0 %v1332
        %1847 = vmatprep.subr.bf16.mxu0 %v1341
        %1848 = vmatpush1.bf16.msra.mxu0 %v1340
        %1849 = vmatprep.subr.bf16.mxu0 %v1349
        %1850 = vmatpush1.bf16.msra.mxu0 %v1348
        %1851 = vmatprep.subr.bf16.mxu0 %v1357
        %1852 = vmatpush1.bf16.msra.mxu0 %v1356
        %1853 = vmatprep.subr.bf16.mxu0 %v1365
        %1854 = vmatpush1.bf16.msra.mxu0 %v1364
        %1855 = vmatprep.subr.bf16.mxu0 %v1373
        %1856 = vmatpush1.bf16.msra.mxu0 %v1372
        %1857 = vmatprep.subr.bf16.mxu0 %v1381
        %1858 = vmatpush1.bf16.msra.mxu0 %v1380
        %1859 = vmatprep.mubr.bf16.mxu0 %v1744
        %1860 = vmatmul.mubr.bf16.gmra.mrb[0].mxu0 %v1743
        %v1861 = vpop.f32.mrb[0].mxu0
        %v1862 = vadd.f32 0.0, %v1861
        %v1863 = vpop.f32.mrb[0].mxu0
        %v1864 = vadd.f32 0.0, %v1863
        %v1865 = vpop.f32.mrb[0].mxu0
        %v1866 = vpop.f32.mrb[0].mxu0
        %1867 = vdwg.mxu0
        %1868 = vmatprep.subr.bf16.mxu0 %v1263
        %1869 = vmatpush1.bf16.msra.mxu0 %v1262
        %1870 = vmatprep.subr.bf16.mxu0 %v1271
        %1871 = vmatpush1.bf16.msra.mxu0 %v1270
        %1872 = vmatprep.subr.bf16.mxu0 %v1279
        %1873 = vmatpush1.bf16.msra.mxu0 %v1278
        %1874 = vmatprep.subr.bf16.mxu0 %v1287
        %1875 = vmatpush1.bf16.msra.mxu0 %v1286
        %1876 = vmatprep.subr.bf16.mxu0 %v1295
        %1877 = vmatpush1.bf16.msra.mxu0 %v1294
        %1878 = vmatprep.subr.bf16.mxu0 %v1303
        %1879 = vmatpush1.bf16.msra.mxu0 %v1302
        %1880 = vmatprep.subr.bf16.mxu0 %v1311
        %1881 = vmatpush1.bf16.msra.mxu0 %v1310
        %1882 = vmatprep.subr.bf16.mxu0 %v1319
        %1883 = vmatpush1.bf16.msra.mxu0 %v1318
        %1884 = vmatprep.subr.bf16.mxu0 %v1327
        %1885 = vmatpush1.bf16.msra.mxu0 %v1326
        %1886 = vmatprep.subr.bf16.mxu0 %v1335
        %1887 = vmatpush1.bf16.msra.mxu0 %v1334
        %1888 = vmatprep.subr.bf16.mxu0 %v1343
        %1889 = vmatpush1.bf16.msra.mxu0 %v1342
        %1890 = vmatprep.subr.bf16.mxu0 %v1351
        %1891 = vmatpush1.bf16.msra.mxu0 %v1350
        %1892 = vmatprep.subr.bf16.mxu0 %v1359
        %1893 = vmatpush1.bf16.msra.mxu0 %v1358
        %1894 = vmatprep.subr.bf16.mxu0 %v1367
        %1895 = vmatpush1.bf16.msra.mxu0 %v1366
        %1896 = vmatprep.subr.bf16.mxu0 %v1375
        %1897 = vmatpush1.bf16.msra.mxu0 %v1374
        %1898 = vmatprep.subr.bf16.mxu0 %v1383
        %1899 = vmatpush1.bf16.msra.mxu0 %v1382
        %1900 = vmatprep.mubr.bf16.mxu0 %v1744
        %1901 = vmatmul.mubr.bf16.gmra.mrb[0].mxu0 %v1743
        %v1902 = vpop.f32.mrb[0].mxu0
        %v1903 = vadd.f32 0.0, %v1902
        %v1904 = vpop.f32.mrb[0].mxu0
        %v1905 = vadd.f32 0.0, %v1904
        %v1906 = vpop.f32.mrb[0].mxu0
        %v1907 = vpop.f32.mrb[0].mxu0
        %1908 = vdwg.mxu0
        %v1909 = vadd.f32 %v1735, %v1780
        %v1910 = vadd.f32 %v1736, %v1782
        %v1911 = vadd.f32 %v1737, %v1821
        %v1912 = vadd.f32 %v1738, %v1823
        %v1913 = vadd.f32 %v1739, %v1862
        %v1914 = vadd.f32 %v1740, %v1864
        %v1915 = vadd.f32 %v1741, %v1903
        %v1916 = vadd.f32 %v1742, %v1905
        %v1917 = vxor.u32 %v1909, 2147483648
        %v1918 = vxor.u32 %v1910, 2147483648
        %v1919 = vxor.u32 %v1911, 2147483648
        %v1920 = vxor.u32 %v1912, 2147483648
        %v1921 = vxor.u32 %v1913, 2147483648
        %v1922 = vxor.u32 %v1914, 2147483648
        %v1923 = vmul.f32 %v1917, 1.442695
        %v1924 = vpow.pop %v1923
        %v1925 = vmul.f32 %v1918, 1.442695
        %v1926 = vpow.pop %v1925
        %v1927 = vmul.f32 %v1919, 1.442695
        %v1928 = vpow.pop %v1927
        %v1929 = vmul.f32 %v1920, 1.442695
        %v1930 = vpow.pop %v1929
        %v1931 = vmul.f32 %v1921, 1.442695
        %v1932 = vpow.pop %v1931
        %v1933 = vmul.f32 %v1922, 1.442695
        %v1934 = vpow.pop %v1933
        %v1935 = vadd.f32 %v1924, 1.0
        %v1936 = vadd.f32 %v1926, 1.0
        %v1937 = vadd.f32 %v1928, 1.0
        %v1938 = vadd.f32 %v1930, 1.0
        %v1939 = vadd.f32 %v1932, 1.0
        %v1940 = vadd.f32 %v1934, 1.0
        %v1941 = vrcp.pop %v1935
        %v1942 = vmul.f32 1.0, %v1941
        %v1943 = vrcp.pop %v1936
        %v1944 = vmul.f32 1.0, %v1943
        %v1945 = vrcp.pop %v1937
        %v1946 = vmul.f32 1.0, %v1945
        %v1947 = vrcp.pop %v1938
        %v1948 = vmul.f32 1.0, %v1947
        %v1949 = vrcp.pop %v1939
        %v1950 = vmul.f32 1.0, %v1949
        %v1951 = vrcp.pop %v1940
        %v1952 = vmul.f32 1.0, %v1951
        %v1953 = vtanh.pop %v1915
        %v1954 = vtanh.pop %v1916
        %v1955 = vmul.f32 %v1946, %v1726
        %v1956 = vmul.f32 %v1948, %v1727
        %v1957 = vmul.f32 %v1942, %v1953
        %v1958 = vmul.f32 %v1944, %v1954
        %v1959 = vadd.f32 %v1955, %v1957
        %v1960 = vadd.f32 %v1956, %v1958
        %v1961 = vtanh.pop %v1959
        %v1962 = vtanh.pop %v1960
        %v1963 = vmul.f32 %v1950, %v1961
        %v1964 = vmul.f32 %v1952, %v1962
        %s1965 = smul.u32 2, 8
        %s1966 = smul.addr %s1965, 8
        %s1967 = scalar_lea.vmem [#allocation2], %s1966
        %v1968 = vld [vmem:[%s1967] sm:$0xff]
        %v1969 = vld [vmem:[%s1967 + $0x8] sm:$0xff]
        %v1970 = vld [vmem:[%s1967 + $0x10] sm:$0xff]
        %v1971 = vld [vmem:[%s1967 + $0x18] sm:$0xff]
        %v1972 = vld [vmem:[%s1967 + $0x20] sm:$0xff]
        %v1973 = vld [vmem:[%s1967 + $0x28] sm:$0xff]
        %v1974 = vld [vmem:[%s1967 + $0x30] sm:$0xff]
        %v1975 = vld [vmem:[%s1967 + $0x38] sm:$0xff]
        %v1976 = vpack.c.bf16 %v1963, %v1963
        %v1977 = vpack.c.bf16 %v1964, %v1964
        %1978 = vmatprep.subr.bf16.mxu0 %v1257
        %1979 = vmatpush1.bf16.msra.mxu0 %v1256
        %1980 = vmatprep.subr.bf16.mxu0 %v1265
        %1981 = vmatpush1.bf16.msra.mxu0 %v1264
        %1982 = vmatprep.subr.bf16.mxu0 %v1273
        %1983 = vmatpush1.bf16.msra.mxu0 %v1272
        %1984 = vmatprep.subr.bf16.mxu0 %v1281
        %1985 = vmatpush1.bf16.msra.mxu0 %v1280
        %1986 = vmatprep.subr.bf16.mxu0 %v1289
        %1987 = vmatpush1.bf16.msra.mxu0 %v1288
        %1988 = vmatprep.subr.bf16.mxu0 %v1297
        %1989 = vmatpush1.bf16.msra.mxu0 %v1296
        %1990 = vmatprep.subr.bf16.mxu0 %v1305
        %1991 = vmatpush1.bf16.msra.mxu0 %v1304
        %1992 = vmatprep.subr.bf16.mxu0 %v1313
        %1993 = vmatpush1.bf16.msra.mxu0 %v1312
        %1994 = vmatprep.subr.bf16.mxu0 %v1321
        %1995 = vmatpush1.bf16.msra.mxu0 %v1320
        %1996 = vmatprep.subr.bf16.mxu0 %v1329
        %1997 = vmatpush1.bf16.msra.mxu0 %v1328
        %1998 = vmatprep.subr.bf16.mxu0 %v1337
        %1999 = vmatpush1.bf16.msra.mxu0 %v1336
        %2000 = vmatprep.subr.bf16.mxu0 %v1345
        %2001 = vmatpush1.bf16.msra.mxu0 %v1344
        %2002 = vmatprep.subr.bf16.mxu0 %v1353
        %2003 = vmatpush1.bf16.msra.mxu0 %v1352
        %2004 = vmatprep.subr.bf16.mxu0 %v1361
        %2005 = vmatpush1.bf16.msra.mxu0 %v1360
        %2006 = vmatprep.subr.bf16.mxu0 %v1369
        %2007 = vmatpush1.bf16.msra.mxu0 %v1368
        %2008 = vmatprep.subr.bf16.mxu0 %v1377
        %2009 = vmatpush1.bf16.msra.mxu0 %v1376
        %2010 = vmatprep.mubr.bf16.mxu0 %v1977
        %2011 = vmatmul.mubr.bf16.gmra.mrb[0].mxu0 %v1976
        %v2012 = vpop.f32.mrb[0].mxu0
        %v2013 = vadd.f32 0.0, %v2012
        %v2014 = vpop.f32.mrb[0].mxu0
        %v2015 = vadd.f32 0.0, %v2014
        %v2016 = vpop.f32.mrb[0].mxu0
        %v2017 = vpop.f32.mrb[0].mxu0
        %2018 = vdwg.mxu0
        %2019 = vmatprep.subr.bf16.mxu0 %v1259
        %2020 = vmatpush1.bf16.msra.mxu0 %v1258
        %2021 = vmatprep.subr.bf16.mxu0 %v1267
        %2022 = vmatpush1.bf16.msra.mxu0 %v1266
        %2023 = vmatprep.subr.bf16.mxu0 %v1275
        %2024 = vmatpush1.bf16.msra.mxu0 %v1274
        %2025 = vmatprep.subr.bf16.mxu0 %v1283
        %2026 = vmatpush1.bf16.msra.mxu0 %v1282
        %2027 = vmatprep.subr.bf16.mxu0 %v1291
        %2028 = vmatpush1.bf16.msra.mxu0 %v1290
        %2029 = vmatprep.subr.bf16.mxu0 %v1299
        %2030 = vmatpush1.bf16.msra.mxu0 %v1298
        %2031 = vmatprep.subr.bf16.mxu0 %v1307
        %2032 = vmatpush1.bf16.msra.mxu0 %v1306
        %2033 = vmatprep.subr.bf16.mxu0 %v1315
        %2034 = vmatpush1.bf16.msra.mxu0 %v1314
        %2035 = vmatprep.subr.bf16.mxu0 %v1323
        %2036 = vmatpush1.bf16.msra.mxu0 %v1322
        %2037 = vmatprep.subr.bf16.mxu0 %v1331
        %2038 = vmatpush1.bf16.msra.mxu0 %v1330
        %2039 = vmatprep.subr.bf16.mxu0 %v1339
        %2040 = vmatpush1.bf16.msra.mxu0 %v1338
        %2041 = vmatprep.subr.bf16.mxu0 %v1347
        %2042 = vmatpush1.bf16.msra.mxu0 %v1346
        %2043 = vmatprep.subr.bf16.mxu0 %v1355
        %2044 = vmatpush1.bf16.msra.mxu0 %v1354
        %2045 = vmatprep.subr.bf16.mxu0 %v1363
        %2046 = vmatpush1.bf16.msra.mxu0 %v1362
        %2047 = vmatprep.subr.bf16.mxu0 %v1371
        %2048 = vmatpush1.bf16.msra.mxu0 %v1370
        %2049 = vmatprep.subr.bf16.mxu0 %v1379
        %2050 = vmatpush1.bf16.msra.mxu0 %v1378
        %2051 = vmatprep.mubr.bf16.mxu0 %v1977
        %2052 = vmatmul.mubr.bf16.gmra.mrb[0].mxu0 %v1976
        %v2053 = vpop.f32.mrb[0].mxu0
        %v2054 = vadd.f32 0.0, %v2053
        %v2055 = vpop.f32.mrb[0].mxu0
        %v2056 = vadd.f32 0.0, %v2055
        %v2057 = vpop.f32.mrb[0].mxu0
        %v2058 = vpop.f32.mrb[0].mxu0
        %2059 = vdwg.mxu0
        %2060 = vmatprep.subr.bf16.mxu0 %v1261
        %2061 = vmatpush1.bf16.msra.mxu0 %v1260
        %2062 = vmatprep.subr.bf16.mxu0 %v1269
        %2063 = vmatpush1.bf16.msra.mxu0 %v1268
        %2064 = vmatprep.subr.bf16.mxu0 %v1277
        %2065 = vmatpush1.bf16.msra.mxu0 %v1276
        %2066 = vmatprep.subr.bf16.mxu0 %v1285
        %2067 = vmatpush1.bf16.msra.mxu0 %v1284
        %2068 = vmatprep.subr.bf16.mxu0 %v1293
        %2069 = vmatpush1.bf16.msra.mxu0 %v1292
        %2070 = vmatprep.subr.bf16.mxu0 %v1301
        %2071 = vmatpush1.bf16.msra.mxu0 %v1300
        %2072 = vmatprep.subr.bf16.mxu0 %v1309
        %2073 = vmatpush1.bf16.msra.mxu0 %v1308
        %2074 = vmatprep.subr.bf16.mxu0 %v1317
        %2075 = vmatpush1.bf16.msra.mxu0 %v1316
        %2076 = vmatprep.subr.bf16.mxu0 %v1325
        %2077 = vmatpush1.bf16.msra.mxu0 %v1324
        %2078 = vmatprep.subr.bf16.mxu0 %v1333
        %2079 = vmatpush1.bf16.msra.mxu0 %v1332
        %2080 = vmatprep.subr.bf16.mxu0 %v1341
        %2081 = vmatpush1.bf16.msra.mxu0 %v1340
        %2082 = vmatprep.subr.bf16.mxu0 %v1349
        %2083 = vmatpush1.bf16.msra.mxu0 %v1348
        %2084 = vmatprep.subr.bf16.mxu0 %v1357
        %2085 = vmatpush1.bf16.msra.mxu0 %v1356
        %2086 = vmatprep.subr.bf16.mxu0 %v1365
        %2087 = vmatpush1.bf16.msra.mxu0 %v1364
        %2088 = vmatprep.subr.bf16.mxu0 %v1373
        %2089 = vmatpush1.bf16.msra.mxu0 %v1372
        %2090 = vmatprep.subr.bf16.mxu0 %v1381
        %2091 = vmatpush1.bf16.msra.mxu0 %v1380
        %2092 = vmatprep.mubr.bf16.mxu0 %v1977
        %2093 = vmatmul.mubr.bf16.gmra.mrb[0].mxu0 %v1976
        %v2094 = vpop.f32.mrb[0].mxu0
        %v2095 = vadd.f32 0.0, %v2094
        %v2096 = vpop.f32.mrb[0].mxu0
        %v2097 = vadd.f32 0.0, %v2096
        %v2098 = vpop.f32.mrb[0].mxu0
        %v2099 = vpop.f32.mrb[0].mxu0
        %2100 = vdwg.mxu0
        %2101 = vmatprep.subr.bf16.mxu0 %v1263
        %2102 = vmatpush1.bf16.msra.mxu0 %v1262
        %2103 = vmatprep.subr.bf16.mxu0 %v1271
        %2104 = vmatpush1.bf16.msra.mxu0 %v1270
        %2105 = vmatprep.subr.bf16.mxu0 %v1279
        %2106 = vmatpush1.bf16.msra.mxu0 %v1278
        %2107 = vmatprep.subr.bf16.mxu0 %v1287
        %2108 = vmatpush1.bf16.msra.mxu0 %v1286
        %2109 = vmatprep.subr.bf16.mxu0 %v1295
        %2110 = vmatpush1.bf16.msra.mxu0 %v1294
        %2111 = vmatprep.subr.bf16.mxu0 %v1303
        %2112 = vmatpush1.bf16.msra.mxu0 %v1302
        %2113 = vmatprep.subr.bf16.mxu0 %v1311
        %2114 = vmatpush1.bf16.msra.mxu0 %v1310
        %2115 = vmatprep.subr.bf16.mxu0 %v1319
        %2116 = vmatpush1.bf16.msra.mxu0 %v1318
        %2117 = vmatprep.subr.bf16.mxu0 %v1327
        %2118 = vmatpush1.bf16.msra.mxu0 %v1326
        %2119 = vmatprep.subr.bf16.mxu0 %v1335
        %2120 = vmatpush1.bf16.msra.mxu0 %v1334
        %2121 = vmatprep.subr.bf16.mxu0 %v1343
        %2122 = vmatpush1.bf16.msra.mxu0 %v1342
        %2123 = vmatprep.subr.bf16.mxu0 %v1351
        %2124 = vmatpush1.bf16.msra.mxu0 %v1350
        %2125 = vmatprep.subr.bf16.mxu0 %v1359
        %2126 = vmatpush1.bf16.msra.mxu0 %v1358
        %2127 = vmatprep.subr.bf16.mxu0 %v1367
        %2128 = vmatpush1.bf16.msra.mxu0 %v1366
        %2129 = vmatprep.subr.bf16.mxu0 %v1375
        %2130 = vmatpush1.bf16.msra.mxu0 %v1374
        %2131 = vmatprep.subr.bf16.mxu0 %v1383
        %2132 = vmatpush1.bf16.msra.mxu0 %v1382
        %2133 = vmatprep.mubr.bf16.mxu0 %v1977
        %2134 = vmatmul.mubr.bf16.gmra.mrb[0].mxu0 %v1976
        %v2135 = vpop.f32.mrb[0].mxu0
        %v2136 = vadd.f32 0.0, %v2135
        %v2137 = vpop.f32.mrb[0].mxu0
        %v2138 = vadd.f32 0.0, %v2137
        %v2139 = vpop.f32.mrb[0].mxu0
        %v2140 = vpop.f32.mrb[0].mxu0
        %2141 = vdwg.mxu0
        %v2142 = vadd.f32 %v1968, %v2013
        %v2143 = vadd.f32 %v1969, %v2015
        %v2144 = vadd.f32 %v1970, %v2054
        %v2145 = vadd.f32 %v1971, %v2056
        %v2146 = vadd.f32 %v1972, %v2095
        %v2147 = vadd.f32 %v1973, %v2097
        %v2148 = vadd.f32 %v1974, %v2136
        %v2149 = vadd.f32 %v1975, %v2138
        %v2150 = vxor.u32 %v2142, 2147483648
        %v2151 = vxor.u32 %v2143, 2147483648
        %v2152 = vxor.u32 %v2144, 2147483648
        %v2153 = vxor.u32 %v2145, 2147483648
        %v2154 = vxor.u32 %v2146, 2147483648
        %v2155 = vxor.u32 %v2147, 2147483648
        %v2156 = vmul.f32 %v2150, 1.442695
        %v2157 = vpow.pop %v2156
        %v2158 = vmul.f32 %v2151, 1.442695
        %v2159 = vpow.pop %v2158
        %v2160 = vmul.f32 %v2152, 1.442695
        %v2161 = vpow.pop %v2160
        %v2162 = vmul.f32 %v2153, 1.442695
        %v2163 = vpow.pop %v2162
        %v2164 = vmul.f32 %v2154, 1.442695
        %v2165 = vpow.pop %v2164
        %v2166 = vmul.f32 %v2155, 1.442695
        %v2167 = vpow.pop %v2166
        %v2168 = vadd.f32 %v2157, 1.0
        %v2169 = vadd.f32 %v2159, 1.0
        %v2170 = vadd.f32 %v2161, 1.0
        %v2171 = vadd.f32 %v2163, 1.0
        %v2172 = vadd.f32 %v2165, 1.0
        %v2173 = vadd.f32 %v2167, 1.0
        %v2174 = vrcp.pop %v2168
        %v2175 = vmul.f32 1.0, %v2174
        %v2176 = vrcp.pop %v2169
        %v2177 = vmul.f32 1.0, %v2176
        %v2178 = vrcp.pop %v2170
        %v2179 = vmul.f32 1.0, %v2178
        %v2180 = vrcp.pop %v2171
        %v2181 = vmul.f32 1.0, %v2180
        %v2182 = vrcp.pop %v2172
        %v2183 = vmul.f32 1.0, %v2182
        %v2184 = vrcp.pop %v2173
        %v2185 = vmul.f32 1.0, %v2184
        %v2186 = vtanh.pop %v2148
        %v2187 = vtanh.pop %v2149
        %v2188 = vmul.f32 %v2179, %v1959
        %v2189 = vmul.f32 %v2181, %v1960
        %v2190 = vmul.f32 %v2175, %v2186
        %v2191 = vmul.f32 %v2177, %v2187
        %v2192 = vadd.f32 %v2188, %v2190
        %v2193 = vadd.f32 %v2189, %v2191
        %v2194 = vtanh.pop %v2192
        %v2195 = vtanh.pop %v2193
        %v2196 = vmul.f32 %v2183, %v2194
        %v2197 = vmul.f32 %v2185, %v2195
        %s2198 = smul.u32 3, 8
        %s2199 = smul.addr %s2198, 8
        %s2200 = scalar_lea.vmem [#allocation2], %s2199
        %v2201 = vld [vmem:[%s2200] sm:$0xff]
        %v2202 = vld [vmem:[%s2200 + $0x8] sm:$0xff]
        %v2203 = vld [vmem:[%s2200 + $0x10] sm:$0xff]
        %v2204 = vld [vmem:[%s2200 + $0x18] sm:$0xff]
        %v2205 = vld [vmem:[%s2200 + $0x20] sm:$0xff]
        %v2206 = vld [vmem:[%s2200 + $0x28] sm:$0xff]
        %v2207 = vld [vmem:[%s2200 + $0x30] sm:$0xff]
        %v2208 = vld [vmem:[%s2200 + $0x38] sm:$0xff]
        %v2209 = vpack.c.bf16 %v2196, %v2196
        %v2210 = vpack.c.bf16 %v2197, %v2197
        %2211 = vmatprep.subr.bf16.mxu0 %v1257
        %2212 = vmatpush1.bf16.msra.mxu0 %v1256
        %2213 = vmatprep.subr.bf16.mxu0 %v1265
        %2214 = vmatpush1.bf16.msra.mxu0 %v1264
        %2215 = vmatprep.subr.bf16.mxu0 %v1273
        %2216 = vmatpush1.bf16.msra.mxu0 %v1272
        %2217 = vmatprep.subr.bf16.mxu0 %v1281
        %2218 = vmatpush1.bf16.msra.mxu0 %v1280
        %2219 = vmatprep.subr.bf16.mxu0 %v1289
        %2220 = vmatpush1.bf16.msra.mxu0 %v1288
        %2221 = vmatprep.subr.bf16.mxu0 %v1297
        %2222 = vmatpush1.bf16.msra.mxu0 %v1296
        %2223 = vmatprep.subr.bf16.mxu0 %v1305
        %2224 = vmatpush1.bf16.msra.mxu0 %v1304
        %2225 = vmatprep.subr.bf16.mxu0 %v1313
        %2226 = vmatpush1.bf16.msra.mxu0 %v1312
        %2227 = vmatprep.subr.bf16.mxu0 %v1321
        %2228 = vmatpush1.bf16.msra.mxu0 %v1320
        %2229 = vmatprep.subr.bf16.mxu0 %v1329
        %2230 = vmatpush1.bf16.msra.mxu0 %v1328
        %2231 = vmatprep.subr.bf16.mxu0 %v1337
        %2232 = vmatpush1.bf16.msra.mxu0 %v1336
        %2233 = vmatprep.subr.bf16.mxu0 %v1345
        %2234 = vmatpush1.bf16.msra.mxu0 %v1344
        %2235 = vmatprep.subr.bf16.mxu0 %v1353
        %2236 = vmatpush1.bf16.msra.mxu0 %v1352
        %2237 = vmatprep.subr.bf16.mxu0 %v1361
        %2238 = vmatpush1.bf16.msra.mxu0 %v1360
        %2239 = vmatprep.subr.bf16.mxu0 %v1369
        %2240 = vmatpush1.bf16.msra.mxu0 %v1368
        %2241 = vmatprep.subr.bf16.mxu0 %v1377
        %2242 = vmatpush1.bf16.msra.mxu0 %v1376
        %2243 = vmatprep.mubr.bf16.mxu0 %v2210
        %2244 = vmatmul.mubr.bf16.gmra.mrb[0].mxu0 %v2209
        %v2245 = vpop.f32.mrb[0].mxu0
        %v2246 = vadd.f32 0.0, %v2245
        %v2247 = vpop.f32.mrb[0].mxu0
        %v2248 = vadd.f32 0.0, %v2247
        %v2249 = vpop.f32.mrb[0].mxu0
        %v2250 = vpop.f32.mrb[0].mxu0
        %2251 = vdwg.mxu0
        %2252 = vmatprep.subr.bf16.mxu0 %v1259
        %2253 = vmatpush1.bf16.msra.mxu0 %v1258
        %2254 = vmatprep.subr.bf16.mxu0 %v1267
        %2255 = vmatpush1.bf16.msra.mxu0 %v1266
        %2256 = vmatprep.subr.bf16.mxu0 %v1275
        %2257 = vmatpush1.bf16.msra.mxu0 %v1274
        %2258 = vmatprep.subr.bf16.mxu0 %v1283
        %2259 = vmatpush1.bf16.msra.mxu0 %v1282
        %2260 = vmatprep.subr.bf16.mxu0 %v1291
        %2261 = vmatpush1.bf16.msra.mxu0 %v1290
        %2262 = vmatprep.subr.bf16.mxu0 %v1299
        %2263 = vmatpush1.bf16.msra.mxu0 %v1298
        %2264 = vmatprep.subr.bf16.mxu0 %v1307
        %2265 = vmatpush1.bf16.msra.mxu0 %v1306
        %2266 = vmatprep.subr.bf16.mxu0 %v1315
        %2267 = vmatpush1.bf16.msra.mxu0 %v1314
        %2268 = vmatprep.subr.bf16.mxu0 %v1323
        %2269 = vmatpush1.bf16.msra.mxu0 %v1322
        %2270 = vmatprep.subr.bf16.mxu0 %v1331
        %2271 = vmatpush1.bf16.msra.mxu0 %v1330
        %2272 = vmatprep.subr.bf16.mxu0 %v1339
        %2273 = vmatpush1.bf16.msra.mxu0 %v1338
        %2274 = vmatprep.subr.bf16.mxu0 %v1347
        %2275 = vmatpush1.bf16.msra.mxu0 %v1346
        %2276 = vmatprep.subr.bf16.mxu0 %v1355
        %2277 = vmatpush1.bf16.msra.mxu0 %v1354
        %2278 = vmatprep.subr.bf16.mxu0 %v1363
        %2279 = vmatpush1.bf16.msra.mxu0 %v1362
        %2280 = vmatprep.subr.bf16.mxu0 %v1371
        %2281 = vmatpush1.bf16.msra.mxu0 %v1370
        %2282 = vmatprep.subr.bf16.mxu0 %v1379
        %2283 = vmatpush1.bf16.msra.mxu0 %v1378
        %2284 = vmatprep.mubr.bf16.mxu0 %v2210
        %2285 = vmatmul.mubr.bf16.gmra.mrb[0].mxu0 %v2209
        %v2286 = vpop.f32.mrb[0].mxu0
        %v2287 = vadd.f32 0.0, %v2286
        %v2288 = vpop.f32.mrb[0].mxu0
        %v2289 = vadd.f32 0.0, %v2288
        %v2290 = vpop.f32.mrb[0].mxu0
        %v2291 = vpop.f32.mrb[0].mxu0
        %2292 = vdwg.mxu0
        %2293 = vmatprep.subr.bf16.mxu0 %v1261
        %2294 = vmatpush1.bf16.msra.mxu0 %v1260
        %2295 = vmatprep.subr.bf16.mxu0 %v1269
        %2296 = vmatpush1.bf16.msra.mxu0 %v1268
        %2297 = vmatprep.subr.bf16.mxu0 %v1277
        %2298 = vmatpush1.bf16.msra.mxu0 %v1276
        %2299 = vmatprep.subr.bf16.mxu0 %v1285
        %2300 = vmatpush1.bf16.msra.mxu0 %v1284
        %2301 = vmatprep.subr.bf16.mxu0 %v1293
        %2302 = vmatpush1.bf16.msra.mxu0 %v1292
        %2303 = vmatprep.subr.bf16.mxu0 %v1301
        %2304 = vmatpush1.bf16.msra.mxu0 %v1300
        %2305 = vmatprep.subr.bf16.mxu0 %v1309
        %2306 = vmatpush1.bf16.msra.mxu0 %v1308
        %2307 = vmatprep.subr.bf16.mxu0 %v1317
        %2308 = vmatpush1.bf16.msra.mxu0 %v1316
        %2309 = vmatprep.subr.bf16.mxu0 %v1325
        %2310 = vmatpush1.bf16.msra.mxu0 %v1324
        %2311 = vmatprep.subr.bf16.mxu0 %v1333
        %2312 = vmatpush1.bf16.msra.mxu0 %v1332
        %2313 = vmatprep.subr.bf16.mxu0 %v1341
        %2314 = vmatpush1.bf16.msra.mxu0 %v1340
        %2315 = vmatprep.subr.bf16.mxu0 %v1349
        %2316 = vmatpush1.bf16.msra.mxu0 %v1348
        %2317 = vmatprep.subr.bf16.mxu0 %v1357
        %2318 = vmatpush1.bf16.msra.mxu0 %v1356
        %2319 = vmatprep.subr.bf16.mxu0 %v1365
        %2320 = vmatpush1.bf16.msra.mxu0 %v1364
        %2321 = vmatprep.subr.bf16.mxu0 %v1373
        %2322 = vmatpush1.bf16.msra.mxu0 %v1372
        %2323 = vmatprep.subr.bf16.mxu0 %v1381
        %2324 = vmatpush1.bf16.msra.mxu0 %v1380
        %2325 = vmatprep.mubr.bf16.mxu0 %v2210
        %2326 = vmatmul.mubr.bf16.gmra.mrb[0].mxu0 %v2209
        %v2327 = vpop.f32.mrb[0].mxu0
        %v2328 = vadd.f32 0.0, %v2327
        %v2329 = vpop.f32.mrb[0].mxu0
        %v2330 = vadd.f32 0.0, %v2329
        %v2331 = vpop.f32.mrb[0].mxu0
        %v2332 = vpop.f32.mrb[0].mxu0
        %2333 = vdwg.mxu0
        %2334 = vmatprep.subr.bf16.mxu0 %v1263
        %2335 = vmatpush1.bf16.msra.mxu0 %v1262
        %2336 = vmatprep.subr.bf16.mxu0 %v1271
        %2337 = vmatpush1.bf16.msra.mxu0 %v1270
        %2338 = vmatprep.subr.bf16.mxu0 %v1279
        %2339 = vmatpush1.bf16.msra.mxu0 %v1278
        %2340 = vmatprep.subr.bf16.mxu0 %v1287
        %2341 = vmatpush1.bf16.msra.mxu0 %v1286
        %2342 = vmatprep.subr.bf16.mxu0 %v1295
        %2343 = vmatpush1.bf16.msra.mxu0 %v1294
        %2344 = vmatprep.subr.bf16.mxu0 %v1303
        %2345 = vmatpush1.bf16.msra.mxu0 %v1302
        %2346 = vmatprep.subr.bf16.mxu0 %v1311
        %2347 = vmatpush1.bf16.msra.mxu0 %v1310
        %2348 = vmatprep.subr.bf16.mxu0 %v1319
        %2349 = vmatpush1.bf16.msra.mxu0 %v1318
        %2350 = vmatprep.subr.bf16.mxu0 %v1327
        %2351 = vmatpush1.bf16.msra.mxu0 %v1326
        %2352 = vmatprep.subr.bf16.mxu0 %v1335
        %2353 = vmatpush1.bf16.msra.mxu0 %v1334
        %2354 = vmatprep.subr.bf16.mxu0 %v1343
        %2355 = vmatpush1.bf16.msra.mxu0 %v1342
        %2356 = vmatprep.subr.bf16.mxu0 %v1351
        %2357 = vmatpush1.bf16.msra.mxu0 %v1350
        %2358 = vmatprep.subr.bf16.mxu0 %v1359
        %2359 = vmatpush1.bf16.msra.mxu0 %v1358
        %2360 = vmatprep.subr.bf16.mxu0 %v1367
        %2361 = vmatpush1.bf16.msra.mxu0 %v1366
        %2362 = vmatprep.subr.bf16.mxu0 %v1375
        %2363 = vmatpush1.bf16.msra.mxu0 %v1374
        %2364 = vmatprep.subr.bf16.mxu0 %v1383
        %2365 = vmatpush1.bf16.msra.mxu0 %v1382
        %2366 = vmatprep.mubr.bf16.mxu0 %v2210
        %2367 = vmatmul.mubr.bf16.gmra.mrb[0].mxu0 %v2209
        %v2368 = vpop.f32.mrb[0].mxu0
        %v2369 = vadd.f32 0.0, %v2368
        %v2370 = vpop.f32.mrb[0].mxu0
        %v2371 = vadd.f32 0.0, %v2370
        %v2372 = vpop.f32.mrb[0].mxu0
        %v2373 = vpop.f32.mrb[0].mxu0
        %2374 = vdwg.mxu0
        %v2375 = vadd.f32 %v2201, %v2246
        %v2376 = vadd.f32 %v2202, %v2248
        %v2377 = vadd.f32 %v2203, %v2287
        %v2378 = vadd.f32 %v2204, %v2289
        %v2379 = vadd.f32 %v2205, %v2328
        %v2380 = vadd.f32 %v2206, %v2330
        %v2381 = vadd.f32 %v2207, %v2369
        %v2382 = vadd.f32 %v2208, %v2371
        %v2383 = vxor.u32 %v2375, 2147483648
        %v2384 = vxor.u32 %v2376, 2147483648
        %v2385 = vxor.u32 %v2377, 2147483648
        %v2386 = vxor.u32 %v2378, 2147483648
        %v2387 = vxor.u32 %v2379, 2147483648
        %v2388 = vxor.u32 %v2380, 2147483648
        %v2389 = vmul.f32 %v2383, 1.442695
        %v2390 = vpow.pop %v2389
        %v2391 = vmul.f32 %v2384, 1.442695
        %v2392 = vpow.pop %v2391
        %v2393 = vmul.f32 %v2385, 1.442695
        %v2394 = vpow.pop %v2393
        %v2395 = vmul.f32 %v2386, 1.442695
        %v2396 = vpow.pop %v2395
        %v2397 = vmul.f32 %v2387, 1.442695
        %v2398 = vpow.pop %v2397
        %v2399 = vmul.f32 %v2388, 1.442695
        %v2400 = vpow.pop %v2399
        %v2401 = vadd.f32 %v2390, 1.0
        %v2402 = vadd.f32 %v2392, 1.0
        %v2403 = vadd.f32 %v2394, 1.0
        %v2404 = vadd.f32 %v2396, 1.0
        %v2405 = vadd.f32 %v2398, 1.0
        %v2406 = vadd.f32 %v2400, 1.0
        %v2407 = vrcp.pop %v2401
        %v2408 = vmul.f32 1.0, %v2407
        %v2409 = vrcp.pop %v2402
        %v2410 = vmul.f32 1.0, %v2409
        %v2411 = vrcp.pop %v2403
        %v2412 = vmul.f32 1.0, %v2411
        %v2413 = vrcp.pop %v2404
        %v2414 = vmul.f32 1.0, %v2413
        %v2415 = vrcp.pop %v2405
        %v2416 = vmul.f32 1.0, %v2415
        %v2417 = vrcp.pop %v2406
        %v2418 = vmul.f32 1.0, %v2417
        %v2419 = vtanh.pop %v2381
        %v2420 = vtanh.pop %v2382
        %v2421 = vmul.f32 %v2412, %v2192
        %v2422 = vmul.f32 %v2414, %v2193
        %v2423 = vmul.f32 %v2408, %v2419
        %v2424 = vmul.f32 %v2410, %v2420
        %v2425 = vadd.f32 %v2421, %v2423
        %v2426 = vadd.f32 %v2422, %v2424
        %v2427 = vtanh.pop %v2425
        %v2428 = vtanh.pop %v2426
        %v2429 = vmul.f32 %v2416, %v2427
        %v2430 = vmul.f32 %v2418, %v2428
        %2431 = vst [vmem:[#allocation3] sm:$0xff] %v2429
        %2432 = vst [vmem:[#allocation3 + $0x8] sm:$0xff] %v2430
        %2433 = vst [vmem:[#allocation4] sm:$0xff] %v2425
        %2434 = vst [vmem:[#allocation4 + $0x8] sm:$0xff] %v2426
        %p2435 = scmp.eq.s32.totalorder %s25, 1
        // Predicated region
        $region61: #{tpu_custom_call.1} parent=43 // pred_check
          %p2436 = pneg %p2435
        $region62: #{tpu_custom_call.1} parent=43 // pred_check_branch
          %2438 = sbr.rel (%p2436) target = $region64
        $region63: #{tpu_custom_call.1} parent=43 // pred_region
          %v2439 = vpack.c.bf16 %v2429, %v2429
          %v2440 = vpack.c.bf16 %v2430, %v2430
          %v2441 = vld [vmem:[#allocation10] sm:$0xf]
          %v2442 = vld [vmem:[#allocation10 + $0x4] sm:$0xf]
          %v2443 = vld [vmem:[#allocation10 + $0x8] sm:$0xf]
          %v2444 = vld [vmem:[#allocation10 + $0xc] sm:$0xf]
          %v2445 = vld [vmem:[#allocation10 + $0x10] sm:$0xf]
          %v2446 = vld [vmem:[#allocation10 + $0x14] sm:$0xf]
          %v2447 = vld [vmem:[#allocation10 + $0x18] sm:$0xf]
          %v2448 = vld [vmem:[#allocation10 + $0x1c] sm:$0xf]
          %v2449 = vld [vmem:[#allocation10 + $0x20] sm:$0xf]
          %v2450 = vld [vmem:[#allocation10 + $0x24] sm:$0xf]
          %v2451 = vld [vmem:[#allocation10 + $0x28] sm:$0xf]
          %v2452 = vld [vmem:[#allocation10 + $0x2c] sm:$0xf]
          %v2453 = vld [vmem:[#allocation10 + $0x30] sm:$0xf]
          %v2454 = vld [vmem:[#allocation10 + $0x34] sm:$0xf]
          %v2455 = vld [vmem:[#allocation10 + $0x38] sm:$0xf]
          %v2456 = vld [vmem:[#allocation10 + $0x3c] sm:$0xf]
          %v2457 = vld [vmem:[#allocation10 + $0x40] sm:$0xf]
          %v2458 = vld [vmem:[#allocation10 + $0x44] sm:$0xf]
          %v2459 = vld [vmem:[#allocation10 + $0x48] sm:$0xf]
          %v2460 = vld [vmem:[#allocation10 + $0x4c] sm:$0xf]
          %v2461 = vld [vmem:[#allocation10 + $0x50] sm:$0xf]
          %v2462 = vld [vmem:[#allocation10 + $0x54] sm:$0xf]
          %v2463 = vld [vmem:[#allocation10 + $0x58] sm:$0xf]
          %v2464 = vld [vmem:[#allocation10 + $0x5c] sm:$0xf]
          %v2465 = vld [vmem:[#allocation10 + $0x60] sm:$0xf]
          %v2466 = vld [vmem:[#allocation10 + $0x64] sm:$0xf]
          %v2467 = vld [vmem:[#allocation10 + $0x68] sm:$0xf]
          %v2468 = vld [vmem:[#allocation10 + $0x6c] sm:$0xf]
          %v2469 = vld [vmem:[#allocation10 + $0x70] sm:$0xf]
          %v2470 = vld [vmem:[#allocation10 + $0x74] sm:$0xf]
          %v2471 = vld [vmem:[#allocation10 + $0x78] sm:$0xf]
          %v2472 = vld [vmem:[#allocation10 + $0x7c] sm:$0xf]
          %v2473 = vld [vmem:[%s5] sm:$0x1]
          %v2475 = vlaneseq
          %v2476 = vshrl.u32 %v2475, 7
          %v2477 = vsub.s32 0, %v2476
          %v2478 = vrot.slane %v2473, %v2477
          %v2512 = vunpack.c.l.b16 %v2441
          %v2513 = vunpack.c.l.b16 %v2442
          %v2514 = vunpack.c.l.b16 %v2443
          %v2515 = vunpack.c.l.b16 %v2444
          %v2516 = vunpack.c.l.b16 %v2445
          %v2517 = vunpack.c.l.b16 %v2446
          %v2518 = vunpack.c.l.b16 %v2447
          %v2519 = vunpack.c.l.b16 %v2448
          %v2520 = vunpack.c.l.b16 %v2449
          %v2521 = vunpack.c.l.b16 %v2450
          %v2522 = vunpack.c.l.b16 %v2451
          %v2523 = vunpack.c.l.b16 %v2452
          %v2524 = vunpack.c.l.b16 %v2453
          %v2525 = vunpack.c.l.b16 %v2454
          %v2526 = vunpack.c.l.b16 %v2455
          %v2527 = vunpack.c.l.b16 %v2456
          %v2528 = vunpack.c.l.b16 %v2457
          %v2529 = vunpack.c.l.b16 %v2458
          %v2530 = vunpack.c.l.b16 %v2459
          %v2531 = vunpack.c.l.b16 %v2460
          %v2532 = vunpack.c.l.b16 %v2461
          %v2533 = vunpack.c.l.b16 %v2462
          %v2534 = vunpack.c.l.b16 %v2463
          %v2535 = vunpack.c.l.b16 %v2464
          %v2536 = vunpack.c.l.b16 %v2465
          %v2537 = vunpack.c.l.b16 %v2466
          %v2538 = vunpack.c.l.b16 %v2467
          %v2539 = vunpack.c.l.b16 %v2468
          %v2540 = vunpack.c.l.b16 %v2469
          %v2541 = vunpack.c.l.b16 %v2470
          %v2542 = vunpack.c.l.b16 %v2471
          %v2543 = vunpack.c.l.b16 %v2472
          %v2544 = vpack.c.b16 %v2513, %v2512
          %v2545 = vpack.c.b16 %v2515, %v2514
          %v2546 = vpack.c.b16 %v2517, %v2516
          %v2547 = vpack.c.b16 %v2519, %v2518
          %v2548 = vpack.c.b16 %v2521, %v2520
          %v2549 = vpack.c.b16 %v2523, %v2522
          %v2550 = vpack.c.b16 %v2525, %v2524
          %v2551 = vpack.c.b16 %v2527, %v2526
          %v2552 = vpack.c.b16 %v2529, %v2528
          %v2553 = vpack.c.b16 %v2531, %v2530
          %v2554 = vpack.c.b16 %v2533, %v2532
          %v2555 = vpack.c.b16 %v2535, %v2534
          %v2556 = vpack.c.b16 %v2537, %v2536
          %v2557 = vpack.c.b16 %v2539, %v2538
          %v2558 = vpack.c.b16 %v2541, %v2540
          %v2559 = vpack.c.b16 %v2543, %v2542
          %2576 = vmatprep.subr.bf16.mxu0 0
          %2577 = vmatpush1.bf16.msra.mxu0 %v2544
          %2578 = vmatprep.subr.bf16.mxu0 0
          %2579 = vmatpush1.bf16.msra.mxu0 %v2545
          %2580 = vmatprep.subr.bf16.mxu0 0
          %2581 = vmatpush1.bf16.msra.mxu0 %v2546
          %2582 = vmatprep.subr.bf16.mxu0 0
          %2583 = vmatpush1.bf16.msra.mxu0 %v2547
          %2584 = vmatprep.subr.bf16.mxu0 0
          %2585 = vmatpush1.bf16.msra.mxu0 %v2548
          %2586 = vmatprep.subr.bf16.mxu0 0
          %2587 = vmatpush1.bf16.msra.mxu0 %v2549
          %2588 = vmatprep.subr.bf16.mxu0 0
          %2589 = vmatpush1.bf16.msra.mxu0 %v2550
          %2590 = vmatprep.subr.bf16.mxu0 0
          %2591 = vmatpush1.bf16.msra.mxu0 %v2551
          %2592 = vmatprep.subr.bf16.mxu0 0
          %2593 = vmatpush1.bf16.msra.mxu0 %v2552
          %2594 = vmatprep.subr.bf16.mxu0 0
          %2595 = vmatpush1.bf16.msra.mxu0 %v2553
          %2596 = vmatprep.subr.bf16.mxu0 0
          %2597 = vmatpush1.bf16.msra.mxu0 %v2554
          %2598 = vmatprep.subr.bf16.mxu0 0
          %2599 = vmatpush1.bf16.msra.mxu0 %v2555
          %2600 = vmatprep.subr.bf16.mxu0 0
          %2601 = vmatpush1.bf16.msra.mxu0 %v2556
          %2602 = vmatprep.subr.bf16.mxu0 0
          %2603 = vmatpush1.bf16.msra.mxu0 %v2557
          %2604 = vmatprep.subr.bf16.mxu0 0
          %2605 = vmatpush1.bf16.msra.mxu0 %v2558
          %2606 = vmatprep.subr.bf16.mxu0 0
          %2607 = vmatpush1.bf16.msra.mxu0 %v2559
          %2608 = vmatprep.mubr.bf16.mxu0 %v2440
          %2609 = vmatmul.mubr.bf16.gmra.mrb[0].mxu0 %v2439
          %v2610 = vpop.f32.mrb[0].mxu0
          %v2611 = vadd.f32 %v2478, %v2610
          %v2612 = vpop.f32.mrb[0].mxu0
          %v2613 = vpop.f32.mrb[0].mxu0
          %v2614 = vpop.f32.mrb[0].mxu0
          %2615 = vdwg.mxu0
          %2616 = vst [vmem:[#allocation11] sm:$0xff] %v2611
        $region64: #{tpu_custom_call.1} parent=43 // pred_fallthru
          _
        // Predicated region
        $region65: #{tpu_custom_call.1} parent=43 // pred_check
          %p2617 = pneg %p183
        $region66: #{tpu_custom_call.1} parent=43 // pred_check_branch
          %2619 = sbr.rel (%p2617) target = $region68
        $region67: #{tpu_custom_call.1} parent=43 // pred_region
          %s2621 = ssub.s32 128, 128
          %2622 = vsyncadd [#allocation7], %s2621
          %s2623 = smul.addr %s24, 128
          %s2624 = scalar_lea.hbm %s6, %s2623
          %s2626 = sshll.u32 [#allocation11], 4
          %s2627 = int_to_ptr.vmem [resolvable:$true] %s2626
          %2629 = dma.vmem_to_hbm [thread:$0]  %s2627, 128, %s2624, [#allocation7]
        $region68: #{tpu_custom_call.1} parent=43 // pred_fallthru
          _
        // Predicated region
        $region69: #{tpu_custom_call.1} parent=43 // pred_check
          %p2630 = pneg %p183
        $region70: #{tpu_custom_call.1} parent=43 // pred_check_branch
          %2632 = sbr.rel (%p2630) target = $region72
        $region71: #{tpu_custom_call.1} parent=43 // pred_region
          %2633 = dma.done [#allocation7], 128
        $region72: #{tpu_custom_call.1} parent=43 // pred_fallthru
          _
      $region44: #{tpu_custom_call.1} parent=5 // pred_fallthru
        _
      %p2634 = scmp.le.s32.totalorder 2, %s15
      // Predicated region
      $region73: #{tpu_custom_call.1} parent=5 // pred_check
        %p2635 = pneg %p2634
      $region74: #{tpu_custom_call.1} parent=5 // pred_check_branch
        %2637 = sbr.rel (%p2635) target = $region76
      $region75: #{tpu_custom_call.1} parent=5 // pred_region
        %s2638 = ssub.s32 %s15, 2
      $region76: #{tpu_custom_call.1} parent=5 // pred_fallthru
        _
    $region6: #{tpu_custom_call.1} parent=1 // loop_footer
      %s19 = sadd.s32 1, %s15
    $region7: #{tpu_custom_call.1} parent=1 // loop_footer_branch
      %14 = sbr.rel target = $region3
    $region8: #{tpu_custom_call.1} parent=1 // loop_exit
      _
    %2639 = vsyncpa [#allocation6], 1
    %s2640 = scalar_lea.sflag [#allocation6], 1
    %2641 = vsyncpa %s2640, 1
    %2642 = vsyncpa [#allocation9], 1
    %2643 = vsyncpa [#allocation7], 1
    %s2644 = scalar_lea.sflag [#allocation7], 1
    %2645 = vsyncpa %s2644, 1

</llo_original>
